<compile_context>
chip_gen: v7x
topology: tpu7x:2x2x1
jax: 0.10.0
libtpu: 0.0.40
codegen_flags: <defaults>
</compile_context>

<pallas_src>
import functools

import jax
import jax.numpy as jnp
from jax.experimental import pallas as pl
from jax.experimental import pallas as _pl_unused  # noqa: F401
from jax.experimental.pallas import tpu as pltpu  # noqa: F401  (available if tiling is added)


def _mlp_kernel(x_ref,
                w1_ref, gbe1_ref,
                w2_ref, gbe2_ref,
                w3_ref, b3_ref,
                o_ref):
    eps = 1e-5

    x = x_ref[...]                                                   # (B, 128) f32

    # ---- Linear(128 -> 1024) [bias cancelled by BN] + BatchNorm1d(1024) + ReLU ----
    h1 = jnp.dot(x.astype(jnp.bfloat16), w1_ref[...],
                 preferred_element_type=jnp.float32)                 # (B, 1024) f32
    mu1 = jnp.mean(h1, axis=0, keepdims=True)
    var1 = jnp.mean(h1 * h1, axis=0, keepdims=True) - mu1 * mu1      # one-pass biased var
    scale1 = gbe1_ref[0:1, :] * jax.lax.rsqrt(var1 + eps)            # gamma * rsqrt
    shift1 = gbe1_ref[1:2, :] - mu1 * scale1                         # beta - mu*scale
    h1 = jnp.maximum(h1 * scale1 + shift1, 0.0)

    # ---- Linear(1024 -> 256) [bias cancelled by BN] + BatchNorm1d(256) + ReLU ----
    h2 = jnp.dot(h1.astype(jnp.bfloat16), w2_ref[...],
                 preferred_element_type=jnp.float32)                 # (B, 256) f32
    mu2 = jnp.mean(h2, axis=0, keepdims=True)
    var2 = jnp.mean(h2 * h2, axis=0, keepdims=True) - mu2 * mu2
    scale2 = gbe2_ref[0:1, :] * jax.lax.rsqrt(var2 + eps)
    shift2 = gbe2_ref[1:2, :] - mu2 * scale2
    h2 = jnp.maximum(h2 * scale2 + shift2, 0.0)

    # ---- Linear(256 -> n_pad), zero-padded to 128 lanes (unmasked stores) ----
    o_ref[...] = (jnp.dot(h2.astype(jnp.bfloat16), w3_ref[...],
                          preferred_element_type=jnp.float32)
                  + b3_ref[...]).astype(o_ref.dtype)


def prepare_params(params):
    """One-time packing of module parameters into kernel operands.

    Call once (e.g. after each optimizer step), NOT per forward call — this is
    the parameter-prep work hoisted out of the jitted forward path.
    """
    n_classes = params["w3"].shape[1]
    n_pad = ((n_classes + 127) // 128) * 128                         # lane-dense output

    # bf16 weights for all three matmuls (halves weight HBM bytes; BN math stays f32).
    w1 = params["w1"].astype(jnp.bfloat16)                           # (128, 1024)
    w2 = params["w2"].astype(jnp.bfloat16)                           # (1024, 256)
    w3 = jnp.pad(params["w3"],
                 ((0, 0), (0, n_pad - n_classes))).astype(jnp.bfloat16)   # (256, n_pad)
    b3 = jnp.pad(params["b3"], ((0, 0), (0, n_pad - n_classes)))     # (1, n_pad) f32

    # Pack gamma/beta per BN layer into a single (2, N) operand (fewer tiny DMAs).
    gbe1 = jnp.concatenate([params["g1"], params["be1"]], axis=0)    # (2, 1024) f32
    gbe2 = jnp.concatenate([params["g2"], params["be2"]], axis=0)    # (2, 256)  f32

    packed = dict(w1=w1, gbe1=gbe1, w2=w2, gbe2=gbe2, w3=w3, b3=b3)
    # Materialize now so no prep op is re-executed per forward call.
    packed = jax.tree_util.tree_map(jax.block_until_ready, packed)
    return packed, n_classes


@functools.partial(jax.jit, static_argnames=("n_classes",))
def label_predictor_forward(x, packed, *, n_classes):
    """Pallas implementation of LabelPredictor.forward (training-mode BN)."""
    B = x.shape[0]
    n_pad = packed["w3"].shape[1]

    def full(shape):
        return pl.BlockSpec(shape, lambda: (0,) * len(shape))

    operands = (x, packed["w1"], packed["gbe1"], packed["w2"], packed["gbe2"],
                packed["w3"], packed["b3"])

    d_in = packed["w1"].shape[0]
    d_h1 = packed["w1"].shape[1]
    d_h2 = packed["w2"].shape[1]
    flops = 2 * B * (d_in * d_h1 + d_h1 * d_h2 + d_h2 * n_pad)
    bytes_accessed = (sum(int(op.size) * op.dtype.itemsize for op in operands)
                      + B * n_pad * 4)
    cost = pl.CostEstimate(flops=flops,
                           transcendentals=d_h1 + d_h2,              # rsqrt per feature
                           bytes_accessed=bytes_accessed)

    out = pl.pallas_call(
        _mlp_kernel,
        out_shape=jax.ShapeDtypeStruct((B, n_pad), jnp.float32),
        in_specs=[full(op.shape) for op in operands],
        out_specs=full((B, n_pad)),
        cost_estimate=cost,
    )(*operands)

    # If downstream code can consume the padded (B, n_pad) block, this slice can
    # be dropped as well.
    return out[:, :n_classes]


def init_params(key, n_classes=10):
    """Deterministic synthetic parameters matching the nn.Module shapes."""
    ks = jax.random.split(key, 8)

    def lin(kw, kb, fan_in, fan_out):
        bound = 1.0 / jnp.sqrt(fan_in)
        w = jax.random.uniform(kw, (fan_in, fan_out), jnp.float32, -bound, bound)
        b = jax.random.uniform(kb, (1, fan_out), jnp.float32, -bound, bound)
        return w, b

    w1, b1 = lin(ks[0], ks[1], 128, 1024)
    w2, b2 = lin(ks[2], ks[3], 1024, 256)
    w3, b3 = lin(ks[4], ks[5], 256, n_classes)

    # BatchNorm affine params (PyTorch default: gamma=1, beta=0) — perturbed so
    # the affine path is exercised.
    g1 = 1.0 + 0.1 * jax.random.normal(ks[6], (1, 1024), jnp.float32)
    be1 = 0.1 * jax.random.normal(ks[7], (1, 1024), jnp.float32)
    g2 = jnp.ones((1, 256), jnp.float32)
    be2 = jnp.zeros((1, 256), jnp.float32)

    return dict(w1=w1, b1=b1, g1=g1, be1=be1,
                w2=w2, b2=b2, g2=g2, be2=be2,
                w3=w3, b3=b3)


def _reference_forward(x, p, use_bf16=False):
    """Pure-JAX reference of the full PyTorch module (biases b1/b2 included)."""
    eps = 1e-5
    in_dt = jnp.bfloat16 if use_bf16 else jnp.float32

    def bn_relu(h, g, be):
        mu = jnp.mean(h, axis=0, keepdims=True)
        var = jnp.mean((h - mu) ** 2, axis=0, keepdims=True)
        return jnp.maximum((h - mu) * jax.lax.rsqrt(var + eps) * g + be, 0.0)

    h = jnp.dot(x.astype(in_dt), p["w1"].astype(in_dt),
                preferred_element_type=jnp.float32) + p["b1"]
    h = bn_relu(h, p["g1"], p["be1"])
    h = jnp.dot(h.astype(in_dt), p["w2"].astype(in_dt),
                preferred_element_type=jnp.float32) + p["b2"]
    h = bn_relu(h, p["g2"], p["be2"])
    return jnp.dot(h.astype(in_dt), p["w3"].astype(in_dt),
                   preferred_element_type=jnp.float32) + p["b3"]


if __name__ == "__main__":
    key = jax.random.PRNGKey(0)
    k_x, k_p = jax.random.split(key)

    B, D_IN, N_CLASSES = 8, 128, 10
    x = jax.random.normal(k_x, (B, D_IN), jnp.float32)
    params = init_params(k_p, n_classes=N_CLASSES)

    # One-time prep (hoisted out of the per-call path).
    packed, n_classes = prepare_params(params)

    out = jax.block_until_ready(label_predictor_forward(x, packed, n_classes=n_classes))
    assert out.shape == (B, N_CLASSES)

    # Tight check vs. a bf16-weight reference (same precision as the kernel's MXU
    # path; also validates that dropping b1/b2 under training-mode BN is exact).
    ref_bf16 = _reference_forward(x, params, use_bf16=True)
    assert jnp.allclose(out, ref_bf16, atol=2e-3, rtol=2e-3), "mismatch vs bf16 reference"

    # Loose check vs. the full-f32 PyTorch-semantics reference (bf16 weight rounding).
    ref_f32 = _reference_forward(x, params, use_bf16=False)
    assert jnp.allclose(out, ref_f32, atol=5e-2, rtol=5e-2), "mismatch vs f32 reference"

    print("KERNEL_OK")
</pallas_src>

<mosaic_0001>
module attributes {stable_mosaic.version = 11 : i64} {
  func.func @_mlp_kernel(%arg0: memref<8x128xf32, #tpu.memory_space<vmem>>, %arg1: memref<128x1024xbf16, #tpu.memory_space<vmem>>, %arg2: memref<2x1024xf32, #tpu.memory_space<vmem>>, %arg3: memref<1024x256xbf16, #tpu.memory_space<vmem>>, %arg4: memref<2x256xf32, #tpu.memory_space<vmem>>, %arg5: memref<256x128xbf16, #tpu.memory_space<vmem>>, %arg6: memref<1x128xf32, #tpu.memory_space<vmem>>, %arg7: memref<8x128xf32, #tpu.memory_space<vmem>>) attributes {dimension_semantics = [], scalar_prefetch = 0 : i64, scratch_operands = 0 : i64, tpu.core_type = #tpu.core_type<tc>} {
    %c0 = arith.constant 0 : index
    %c0_0 = arith.constant 0 : index
    %0 = vector.load %arg0[%c0, %c0_0] : memref<8x128xf32, #tpu.memory_space<vmem>>, vector<8x128xf32>
    %1 = arith.truncf %0 : vector<8x128xf32> to vector<8x128xbf16>
    %c0_1 = arith.constant 0 : index
    %c0_2 = arith.constant 0 : index
    %2 = vector.load %arg1[%c0_1, %c0_2] : memref<128x1024xbf16, #tpu.memory_space<vmem>>, vector<128x1024xbf16>
    %cst = arith.constant dense<0.000000e+00> : vector<8x1024xf32>
    %3 = tpu.matmul %1, %2, %cst {dimension_numbers = #tpu.dot_dimension_numbers<[1], [0], [0], [1], [0, 0, 1, 1], [], []>} : vector<8x128xbf16>, vector<128x1024xbf16>, vector<8x1024xf32> -> vector<8x1024xf32>
    %cst_3 = arith.constant dense<0.000000e+00> : vector<1024xf32>
    %4 = vector.multi_reduction <add>, %3, %cst_3 [0] : vector<8x1024xf32> to vector<1024xf32>
    %5 = vector.shape_cast %4 : vector<1024xf32> to vector<1x1024xf32>
    %cst_4 = arith.constant 8.000000e+00 : f32
    %6 = vector.broadcast %cst_4 : f32 to vector<1x1024xf32>
    %7 = arith.divf %5, %6 : vector<1x1024xf32>
    %8 = arith.mulf %3, %3 : vector<8x1024xf32>
    %cst_5 = arith.constant dense<0.000000e+00> : vector<1024xf32>
    %9 = vector.multi_reduction <add>, %8, %cst_5 [0] : vector<8x1024xf32> to vector<1024xf32>
    %10 = vector.shape_cast %9 : vector<1024xf32> to vector<1x1024xf32>
    %cst_6 = arith.constant 8.000000e+00 : f32
    %11 = vector.broadcast %cst_6 : f32 to vector<1x1024xf32>
    %12 = arith.divf %10, %11 : vector<1x1024xf32>
    %13 = arith.mulf %7, %7 : vector<1x1024xf32>
    %14 = arith.subf %12, %13 : vector<1x1024xf32>
    %c0_7 = arith.constant 0 : index
    %c0_8 = arith.constant 0 : index
    %15 = vector.load %arg2[%c0_7, %c0_8] : memref<2x1024xf32, #tpu.memory_space<vmem>>, vector<1x1024xf32>
    %cst_9 = arith.constant 9.99999974E-6 : f32
    %16 = vector.broadcast %cst_9 : f32 to vector<1x1024xf32>
    %17 = arith.addf %14, %16 : vector<1x1024xf32>
    %18 = math.rsqrt %17 : vector<1x1024xf32>
    %19 = arith.mulf %15, %18 : vector<1x1024xf32>
    %c1 = arith.constant 1 : index
    %c0_10 = arith.constant 0 : index
    %20 = vector.load %arg2[%c1, %c0_10] : memref<2x1024xf32, #tpu.memory_space<vmem>>, vector<1x1024xf32>
    %21 = arith.mulf %7, %19 : vector<1x1024xf32>
    %22 = arith.subf %20, %21 : vector<1x1024xf32>
    %23 = vector.broadcast %19 : vector<1x1024xf32> to vector<8x1024xf32>
    %24 = arith.mulf %3, %23 : vector<8x1024xf32>
    %25 = vector.broadcast %22 : vector<1x1024xf32> to vector<8x1024xf32>
    %26 = arith.addf %24, %25 : vector<8x1024xf32>
    %cst_11 = arith.constant 0.000000e+00 : f32
    %27 = vector.broadcast %cst_11 : f32 to vector<8x1024xf32>
    %28 = arith.maximumf %26, %27 : vector<8x1024xf32>
    %29 = arith.truncf %28 : vector<8x1024xf32> to vector<8x1024xbf16>
    %c0_12 = arith.constant 0 : index
    %c0_13 = arith.constant 0 : index
    %30 = vector.load %arg3[%c0_12, %c0_13] : memref<1024x256xbf16, #tpu.memory_space<vmem>>, vector<1024x256xbf16>
    %cst_14 = arith.constant dense<0.000000e+00> : vector<8x256xf32>
    %31 = tpu.matmul %29, %30, %cst_14 {dimension_numbers = #tpu.dot_dimension_numbers<[1], [0], [0], [1], [0, 0, 1, 1], [], []>} : vector<8x1024xbf16>, vector<1024x256xbf16>, vector<8x256xf32> -> vector<8x256xf32>
    %cst_15 = arith.constant dense<0.000000e+00> : vector<256xf32>
    %32 = vector.multi_reduction <add>, %31, %cst_15 [0] : vector<8x256xf32> to vector<256xf32>
    %33 = vector.shape_cast %32 : vector<256xf32> to vector<1x256xf32>
    %cst_16 = arith.constant 8.000000e+00 : f32
    %34 = vector.broadcast %cst_16 : f32 to vector<1x256xf32>
    %35 = arith.divf %33, %34 : vector<1x256xf32>
    %36 = arith.mulf %31, %31 : vector<8x256xf32>
    %cst_17 = arith.constant dense<0.000000e+00> : vector<256xf32>
    %37 = vector.multi_reduction <add>, %36, %cst_17 [0] : vector<8x256xf32> to vector<256xf32>
    %38 = vector.shape_cast %37 : vector<256xf32> to vector<1x256xf32>
    %cst_18 = arith.constant 8.000000e+00 : f32
    %39 = vector.broadcast %cst_18 : f32 to vector<1x256xf32>
    %40 = arith.divf %38, %39 : vector<1x256xf32>
    %41 = arith.mulf %35, %35 : vector<1x256xf32>
    %42 = arith.subf %40, %41 : vector<1x256xf32>
    %c0_19 = arith.constant 0 : index
    %c0_20 = arith.constant 0 : index
    %43 = vector.load %arg4[%c0_19, %c0_20] : memref<2x256xf32, #tpu.memory_space<vmem>>, vector<1x256xf32>
    %cst_21 = arith.constant 9.99999974E-6 : f32
    %44 = vector.broadcast %cst_21 : f32 to vector<1x256xf32>
    %45 = arith.addf %42, %44 : vector<1x256xf32>
    %46 = math.rsqrt %45 : vector<1x256xf32>
    %47 = arith.mulf %43, %46 : vector<1x256xf32>
    %c1_22 = arith.constant 1 : index
    %c0_23 = arith.constant 0 : index
    %48 = vector.load %arg4[%c1_22, %c0_23] : memref<2x256xf32, #tpu.memory_space<vmem>>, vector<1x256xf32>
    %49 = arith.mulf %35, %47 : vector<1x256xf32>
    %50 = arith.subf %48, %49 : vector<1x256xf32>
    %51 = vector.broadcast %47 : vector<1x256xf32> to vector<8x256xf32>
    %52 = arith.mulf %31, %51 : vector<8x256xf32>
    %53 = vector.broadcast %50 : vector<1x256xf32> to vector<8x256xf32>
    %54 = arith.addf %52, %53 : vector<8x256xf32>
    %cst_24 = arith.constant 0.000000e+00 : f32
    %55 = vector.broadcast %cst_24 : f32 to vector<8x256xf32>
    %56 = arith.maximumf %54, %55 : vector<8x256xf32>
    %57 = arith.truncf %56 : vector<8x256xf32> to vector<8x256xbf16>
    %c0_25 = arith.constant 0 : index
    %c0_26 = arith.constant 0 : index
    %58 = vector.load %arg5[%c0_25, %c0_26] : memref<256x128xbf16, #tpu.memory_space<vmem>>, vector<256x128xbf16>
    %cst_27 = arith.constant dense<0.000000e+00> : vector<8x128xf32>
    %59 = tpu.matmul %57, %58, %cst_27 {dimension_numbers = #tpu.dot_dimension_numbers<[1], [0], [0], [1], [0, 0, 1, 1], [], []>} : vector<8x256xbf16>, vector<256x128xbf16>, vector<8x128xf32> -> vector<8x128xf32>
    %c0_28 = arith.constant 0 : index
    %c0_29 = arith.constant 0 : index
    %60 = vector.load %arg6[%c0_28, %c0_29] : memref<1x128xf32, #tpu.memory_space<vmem>>, vector<1x128xf32>
    %61 = vector.broadcast %60 : vector<1x128xf32> to vector<8x128xf32>
    %62 = arith.addf %59, %61 : vector<8x128xf32>
    %c0_30 = arith.constant 0 : index
    %c0_31 = arith.constant 0 : index
    %63 = vector.load %arg7[%c0_30, %c0_31] : memref<8x128xf32, #tpu.memory_space<vmem>>, vector<8x128xf32>
    tpu.vector_store %arg7[%c0_30, %c0_31], %62 {strides = array<i32>} : memref<8x128xf32, #tpu.memory_space<vmem>>, vector<8x128xf32>,
    return
  }
}

</mosaic_0001>

<llo_original>
// kernel: label_predictor_forward.1
$region0: #{label_predictor_forward.1}
  #allocation0 [shape = 'u32[]', space=smem, size = 0x4, offset = 0x4, fixed_abs, tag = 'smem constant byte address 0x4 - core index']
  #allocation1 [shape = 'u32[144,128]{1,0:T(1,128)}', space=vmem, size = 0x12000, scoped, tag = 'internal scratch']
  %s0 = inlined_call_operand.hbm [shape: f32[8,128], index: 0, kind: input, shape index: {}]
  %s1 = inlined_call_operand.hbm [shape: bf16[128,1024], index: 1, kind: input, shape index: {}]
  %s2 = inlined_call_operand.hbm [shape: f32[2,1024], index: 2, kind: input, shape index: {}]
  %s3 = inlined_call_operand.hbm [shape: bf16[1024,256], index: 3, kind: input, shape index: {}]
  %s4 = inlined_call_operand.vmem [shape: f32[2,256], index: 4, kind: input, shape index: {}]
  %s5 = inlined_call_operand.hbm [shape: bf16[256,128], index: 5, kind: input, shape index: {}]
  %s6 = inlined_call_operand.vmem [shape: f32[1,128], index: 6, kind: input, shape index: {}]
  %s7 = inlined_call_operand.hbm [shape: f32[8,128], index: 7, kind: output, shape index: {}]
  %s8 = sld [smem:[#allocation0]]
  $region58: #{label_predictor_forward.1} parent=0
    _
  %s10 = ssub.s32 1, %s8
  %s11 = scalar_select 0, %s10, %s8
  $region1: #{label_predictor_forward.1} parent=0
    #allocation2 [shape = 'u8[4096]{0}', space=vmem, size = 0x1000, scoped, tag = 'input window, operand 0, single buffered']
    #allocation3 [shape = 's32[1]{0}', space=sflag, size = 0x4, scoped, tag = 'scoped memory for label_predictor_forward.1']
    #allocation4 [shape = 's32[1]{0}', space=sflag, size = 0x4, scoped, tag = 'scoped memory for label_predictor_forward.1']
    #allocation5 [shape = 'u8[262144]{0}', space=vmem, size = 0x40000, scoped, tag = 'input window, operand 1, single buffered']
    #allocation6 [shape = 's32[1]{0}', space=sflag, size = 0x4, scoped, tag = 'scoped memory for label_predictor_forward.1']
    #allocation7 [shape = 'u8[8192]{0}', space=vmem, size = 0x2000, scoped, tag = 'input window, operand 2, single buffered']
    #allocation8 [shape = 'u8[524288]{0}', space=vmem, size = 0x80000, scoped, tag = 'input window, operand 3, single buffered']
    #allocation9 [shape = 's32[1]{0}', space=sflag, size = 0x4, scoped, tag = 'scoped memory for label_predictor_forward.1']
    #allocation10 [shape = 'u8[65536]{0}', space=vmem, size = 0x10000, scoped, tag = 'input window, operand 5, single buffered']
    #allocation11 [shape = 'u8[4096]{0}', space=vmem, size = 0x1000, scoped, tag = 'output window, operand 0, single buffered']
    %12 = vsyncpa [#allocation3], 0
    %13 = vsyncpa [#allocation6], 0
    %14 = vsyncpa [#allocation9], 0
    %15 = vsyncpa [#allocation4], 0
    // Predicated region
    $region2: #{label_predictor_forward.1} parent=1 // pred_check
      _
    $region3: #{label_predictor_forward.1} parent=1 // pred_check_branch
      %17 = sbr.rel (0) target = $region5
    $region4: #{label_predictor_forward.1} parent=1 // pred_region
      %s19 = ssub.s32 128, 128
      %20 = vsyncadd [#allocation3], %s19
      %s22 = sshll.u32 [#allocation2], 4
      %s23 = int_to_ptr.vmem [resolvable:$true] %s22
      %25 = dma.hbm_to_vmem [thread:$0]  %s0, 128, %s23, [#allocation3]
    $region5: #{label_predictor_forward.1} parent=1 // pred_fallthru
      _
    // Predicated region
    $region6: #{label_predictor_forward.1} parent=1 // pred_check
      _
    $region7: #{label_predictor_forward.1} parent=1 // pred_check_branch
      %27 = sbr.rel (0) target = $region9
    $region8: #{label_predictor_forward.1} parent=1 // pred_region
      %s29 = ssub.s32 8192, 8192
      %30 = vsyncadd [#allocation6], %s29
      %s31 = sshll.u32 [#allocation5], 4
      %s32 = int_to_ptr.vmem [resolvable:$true] %s31
      %37 = dma.hbm_to_vmem [thread:$0]  %s1, 8192, %s32, [#allocation6], 512, 512, 32
    $region9: #{label_predictor_forward.1} parent=1 // pred_fallthru
      _
    // Predicated region
    $region10: #{label_predictor_forward.1} parent=1 // pred_check
      _
    $region11: #{label_predictor_forward.1} parent=1 // pred_check_branch
      %39 = sbr.rel (0) target = $region13
    $region12: #{label_predictor_forward.1} parent=1 // pred_region
      %s41 = ssub.s32 256, 256
      %42 = vsyncadd [#allocation6], %s41
      %s44 = sshll.u32 [#allocation7], 4
      %s45 = int_to_ptr.vmem [resolvable:$true] %s44
      %47 = dma.hbm_to_vmem [thread:$0]  %s2, 256, %s45, [#allocation6]
    $region13: #{label_predictor_forward.1} parent=1 // pred_fallthru
      _
    // Predicated region
    $region14: #{label_predictor_forward.1} parent=1 // pred_check
      _
    $region15: #{label_predictor_forward.1} parent=1 // pred_check_branch
      %49 = sbr.rel (0) target = $region17
    $region16: #{label_predictor_forward.1} parent=1 // pred_region
      %s51 = ssub.s32 16384, 16384
      %52 = vsyncadd [#allocation9], %s51
      %s53 = sshll.u32 [#allocation8], 4
      %s54 = int_to_ptr.vmem [resolvable:$true] %s53
      %59 = dma.hbm_to_vmem [thread:$0]  %s3, 16384, %s54, [#allocation9], 128, 128, 8
    $region17: #{label_predictor_forward.1} parent=1 // pred_fallthru
      _
    // Predicated region
    $region18: #{label_predictor_forward.1} parent=1 // pred_check
      _
    $region19: #{label_predictor_forward.1} parent=1 // pred_check_branch
      %61 = sbr.rel (0) target = $region21
    $region20: #{label_predictor_forward.1} parent=1 // pred_region
      _
    $region21: #{label_predictor_forward.1} parent=1 // pred_fallthru
      _
    // Predicated region
    $region22: #{label_predictor_forward.1} parent=1 // pred_check
      _
    $region23: #{label_predictor_forward.1} parent=1 // pred_check_branch
      %63 = sbr.rel (0) target = $region25
    $region24: #{label_predictor_forward.1} parent=1 // pred_region
      %s65 = ssub.s32 2048, 2048
      %66 = vsyncadd [#allocation9], %s65
      %s67 = sshll.u32 [#allocation10], 4
      %s68 = int_to_ptr.vmem [resolvable:$true] %s67
      %73 = dma.hbm_to_vmem [thread:$0]  %s5, 2048, %s68, [#allocation9], 64, 64, 4
    $region25: #{label_predictor_forward.1} parent=1 // pred_fallthru
      _
    // Predicated region
    $region26: #{label_predictor_forward.1} parent=1 // pred_check
      _
    $region27: #{label_predictor_forward.1} parent=1 // pred_check_branch
      %75 = sbr.rel (0) target = $region29
    $region28: #{label_predictor_forward.1} parent=1 // pred_region
      _
    $region29: #{label_predictor_forward.1} parent=1 // pred_fallthru
      _
    // Predicated region
    $region30: #{label_predictor_forward.1} parent=1 // pred_check
      _
    $region31: #{label_predictor_forward.1} parent=1 // pred_check_branch
      %77 = sbr.rel (0) target = $region33
    $region32: #{label_predictor_forward.1} parent=1 // pred_region
      %78 = dma.done [#allocation3], 128
    $region33: #{label_predictor_forward.1} parent=1 // pred_fallthru
      _
    // Predicated region
    $region34: #{label_predictor_forward.1} parent=1 // pred_check
      _
    $region35: #{label_predictor_forward.1} parent=1 // pred_check_branch
      %80 = sbr.rel (0) target = $region37
    $region36: #{label_predictor_forward.1} parent=1 // pred_region
      %81 = dma.done [#allocation6], 8192
    $region37: #{label_predictor_forward.1} parent=1 // pred_fallthru
      _
    // Predicated region
    $region38: #{label_predictor_forward.1} parent=1 // pred_check
      _
    $region39: #{label_predictor_forward.1} parent=1 // pred_check_branch
      %83 = sbr.rel (0) target = $region41
    $region40: #{label_predictor_forward.1} parent=1 // pred_region
      %84 = dma.done [#allocation6], 256
    $region41: #{label_predictor_forward.1} parent=1 // pred_fallthru
      _
    // Predicated region
    $region42: #{label_predictor_forward.1} parent=1 // pred_check
      _
    $region43: #{label_predictor_forward.1} parent=1 // pred_check_branch
      %86 = sbr.rel (0) target = $region45
    $region44: #{label_predictor_forward.1} parent=1 // pred_region
      %87 = dma.done [#allocation9], 16384
    $region45: #{label_predictor_forward.1} parent=1 // pred_fallthru
      _
    // Predicated region
    $region46: #{label_predictor_forward.1} parent=1 // pred_check
      _
    $region47: #{label_predictor_forward.1} parent=1 // pred_check_branch
      %89 = sbr.rel (0) target = $region49
    $region48: #{label_predictor_forward.1} parent=1 // pred_region
      %90 = dma.done [#allocation9], 2048
    $region49: #{label_predictor_forward.1} parent=1 // pred_fallthru
      _
    %v92 = vld [vmem:[#allocation2] sm:$0xff]
    %v93 = vpack.c.bf16 %v92, %v92
    %v94 = vld [vmem:[#allocation5] sm:$0xff]
    %v95 = vld [vmem:[#allocation5 + $0x8] sm:$0xff]
    %v96 = vld [vmem:[#allocation5 + $0x10] sm:$0xff]
    %v97 = vld [vmem:[#allocation5 + $0x18] sm:$0xff]
    %v98 = vld [vmem:[#allocation5 + $0x20] sm:$0xff]
    %v99 = vld [vmem:[#allocation5 + $0x28] sm:$0xff]
    %v100 = vld [vmem:[#allocation5 + $0x30] sm:$0xff]
    %v101 = vld [vmem:[#allocation5 + $0x38] sm:$0xff]
    %v102 = vld [vmem:[#allocation5 + $0x40] sm:$0xff]
    %v103 = vld [vmem:[#allocation5 + $0x48] sm:$0xff]
    %v104 = vld [vmem:[#allocation5 + $0x50] sm:$0xff]
    %v105 = vld [vmem:[#allocation5 + $0x58] sm:$0xff]
    %v106 = vld [vmem:[#allocation5 + $0x60] sm:$0xff]
    %v107 = vld [vmem:[#allocation5 + $0x68] sm:$0xff]
    %v108 = vld [vmem:[#allocation5 + $0x70] sm:$0xff]
    %v109 = vld [vmem:[#allocation5 + $0x78] sm:$0xff]
    %v110 = vld [vmem:[#allocation5 + $0x80] sm:$0xff]
    %v111 = vld [vmem:[#allocation5 + $0x88] sm:$0xff]
    %v112 = vld [vmem:[#allocation5 + $0x90] sm:$0xff]
    %v113 = vld [vmem:[#allocation5 + $0x98] sm:$0xff]
    %v114 = vld [vmem:[#allocation5 + $0xa0] sm:$0xff]
    %v115 = vld [vmem:[#allocation5 + $0xa8] sm:$0xff]
    %v116 = vld [vmem:[#allocation5 + $0xb0] sm:$0xff]
    %v117 = vld [vmem:[#allocation5 + $0xb8] sm:$0xff]
    %v118 = vld [vmem:[#allocation5 + $0xc0] sm:$0xff]
    %v119 = vld [vmem:[#allocation5 + $0xc8] sm:$0xff]
    %v120 = vld [vmem:[#allocation5 + $0xd0] sm:$0xff]
    %v121 = vld [vmem:[#allocation5 + $0xd8] sm:$0xff]
    %v122 = vld [vmem:[#allocation5 + $0xe0] sm:$0xff]
    %v123 = vld [vmem:[#allocation5 + $0xe8] sm:$0xff]
    %v124 = vld [vmem:[#allocation5 + $0xf0] sm:$0xff]
    %v125 = vld [vmem:[#allocation5 + $0xf8] sm:$0xff]
    %v126 = vld [vmem:[#allocation5 + $0x100] sm:$0xff]
    %v127 = vld [vmem:[#allocation5 + $0x108] sm:$0xff]
    %v128 = vld [vmem:[#allocation5 + $0x110] sm:$0xff]
    %v129 = vld [vmem:[#allocation5 + $0x118] sm:$0xff]
    %v130 = vld [vmem:[#allocation5 + $0x120] sm:$0xff]
    %v131 = vld [vmem:[#allocation5 + $0x128] sm:$0xff]
    %v132 = vld [vmem:[#allocation5 + $0x130] sm:$0xff]
    %v133 = vld [vmem:[#allocation5 + $0x138] sm:$0xff]
    %v134 = vld [vmem:[#allocation5 + $0x140] sm:$0xff]
    %v135 = vld [vmem:[#allocation5 + $0x148] sm:$0xff]
    %v136 = vld [vmem:[#allocation5 + $0x150] sm:$0xff]
    %v137 = vld [vmem:[#allocation5 + $0x158] sm:$0xff]
    %v138 = vld [vmem:[#allocation5 + $0x160] sm:$0xff]
    %v139 = vld [vmem:[#allocation5 + $0x168] sm:$0xff]
    %v140 = vld [vmem:[#allocation5 + $0x170] sm:$0xff]
    %v141 = vld [vmem:[#allocation5 + $0x178] sm:$0xff]
    %v142 = vld [vmem:[#allocation5 + $0x180] sm:$0xff]
    %v143 = vld [vmem:[#allocation5 + $0x188] sm:$0xff]
    %v144 = vld [vmem:[#allocation5 + $0x190] sm:$0xff]
    %v145 = vld [vmem:[#allocation5 + $0x198] sm:$0xff]
    %v146 = vld [vmem:[#allocation5 + $0x1a0] sm:$0xff]
    %v147 = vld [vmem:[#allocation5 + $0x1a8] sm:$0xff]
    %v148 = vld [vmem:[#allocation5 + $0x1b0] sm:$0xff]
    %v149 = vld [vmem:[#allocation5 + $0x1b8] sm:$0xff]
    %v150 = vld [vmem:[#allocation5 + $0x1c0] sm:$0xff]
    %v151 = vld [vmem:[#allocation5 + $0x1c8] sm:$0xff]
    %v152 = vld [vmem:[#allocation5 + $0x1d0] sm:$0xff]
    %v153 = vld [vmem:[#allocation5 + $0x1d8] sm:$0xff]
    %v154 = vld [vmem:[#allocation5 + $0x1e0] sm:$0xff]
    %v155 = vld [vmem:[#allocation5 + $0x1e8] sm:$0xff]
    %v156 = vld [vmem:[#allocation5 + $0x1f0] sm:$0xff]
    %v157 = vld [vmem:[#allocation5 + $0x1f8] sm:$0xff]
    %v222 = vunpack.c.l.b16 %v94
    %v223 = vunpack.c.h.b16 %v94
    %v224 = vunpack.c.l.b16 %v95
    %v225 = vunpack.c.h.b16 %v95
    %v226 = vunpack.c.l.b16 %v96
    %v227 = vunpack.c.h.b16 %v96
    %v228 = vunpack.c.l.b16 %v97
    %v229 = vunpack.c.h.b16 %v97
    %v230 = vunpack.c.l.b16 %v98
    %v231 = vunpack.c.h.b16 %v98
    %v232 = vunpack.c.l.b16 %v99
    %v233 = vunpack.c.h.b16 %v99
    %v234 = vunpack.c.l.b16 %v100
    %v235 = vunpack.c.h.b16 %v100
    %v236 = vunpack.c.l.b16 %v101
    %v237 = vunpack.c.h.b16 %v101
    %v238 = vunpack.c.l.b16 %v102
    %v239 = vunpack.c.h.b16 %v102
    %v240 = vunpack.c.l.b16 %v103
    %v241 = vunpack.c.h.b16 %v103
    %v242 = vunpack.c.l.b16 %v104
    %v243 = vunpack.c.h.b16 %v104
    %v244 = vunpack.c.l.b16 %v105
    %v245 = vunpack.c.h.b16 %v105
    %v246 = vunpack.c.l.b16 %v106
    %v247 = vunpack.c.h.b16 %v106
    %v248 = vunpack.c.l.b16 %v107
    %v249 = vunpack.c.h.b16 %v107
    %v250 = vunpack.c.l.b16 %v108
    %v251 = vunpack.c.h.b16 %v108
    %v252 = vunpack.c.l.b16 %v109
    %v253 = vunpack.c.h.b16 %v109
    %v254 = vunpack.c.l.b16 %v110
    %v255 = vunpack.c.h.b16 %v110
    %v256 = vunpack.c.l.b16 %v111
    %v257 = vunpack.c.h.b16 %v111
    %v258 = vunpack.c.l.b16 %v112
    %v259 = vunpack.c.h.b16 %v112
    %v260 = vunpack.c.l.b16 %v113
    %v261 = vunpack.c.h.b16 %v113
    %v262 = vunpack.c.l.b16 %v114
    %v263 = vunpack.c.h.b16 %v114
    %v264 = vunpack.c.l.b16 %v115
    %v265 = vunpack.c.h.b16 %v115
    %v266 = vunpack.c.l.b16 %v116
    %v267 = vunpack.c.h.b16 %v116
    %v268 = vunpack.c.l.b16 %v117
    %v269 = vunpack.c.h.b16 %v117
    %v270 = vunpack.c.l.b16 %v118
    %v271 = vunpack.c.h.b16 %v118
    %v272 = vunpack.c.l.b16 %v119
    %v273 = vunpack.c.h.b16 %v119
    %v274 = vunpack.c.l.b16 %v120
    %v275 = vunpack.c.h.b16 %v120
    %v276 = vunpack.c.l.b16 %v121
    %v277 = vunpack.c.h.b16 %v121
    %v278 = vunpack.c.l.b16 %v122
    %v279 = vunpack.c.h.b16 %v122
    %v280 = vunpack.c.l.b16 %v123
    %v281 = vunpack.c.h.b16 %v123
    %v282 = vunpack.c.l.b16 %v124
    %v283 = vunpack.c.h.b16 %v124
    %v284 = vunpack.c.l.b16 %v125
    %v285 = vunpack.c.h.b16 %v125
    %v286 = vunpack.c.l.b16 %v126
    %v287 = vunpack.c.h.b16 %v126
    %v288 = vunpack.c.l.b16 %v127
    %v289 = vunpack.c.h.b16 %v127
    %v290 = vunpack.c.l.b16 %v128
    %v291 = vunpack.c.h.b16 %v128
    %v292 = vunpack.c.l.b16 %v129
    %v293 = vunpack.c.h.b16 %v129
    %v294 = vunpack.c.l.b16 %v130
    %v295 = vunpack.c.h.b16 %v130
    %v296 = vunpack.c.l.b16 %v131
    %v297 = vunpack.c.h.b16 %v131
    %v298 = vunpack.c.l.b16 %v132
    %v299 = vunpack.c.h.b16 %v132
    %v300 = vunpack.c.l.b16 %v133
    %v301 = vunpack.c.h.b16 %v133
    %v302 = vunpack.c.l.b16 %v134
    %v303 = vunpack.c.h.b16 %v134
    %v304 = vunpack.c.l.b16 %v135
    %v305 = vunpack.c.h.b16 %v135
    %v306 = vunpack.c.l.b16 %v136
    %v307 = vunpack.c.h.b16 %v136
    %v308 = vunpack.c.l.b16 %v137
    %v309 = vunpack.c.h.b16 %v137
    %v310 = vunpack.c.l.b16 %v138
    %v311 = vunpack.c.h.b16 %v138
    %v312 = vunpack.c.l.b16 %v139
    %v313 = vunpack.c.h.b16 %v139
    %v314 = vunpack.c.l.b16 %v140
    %v315 = vunpack.c.h.b16 %v140
    %v316 = vunpack.c.l.b16 %v141
    %v317 = vunpack.c.h.b16 %v141
    %v318 = vunpack.c.l.b16 %v142
    %v319 = vunpack.c.h.b16 %v142
    %v320 = vunpack.c.l.b16 %v143
    %v321 = vunpack.c.h.b16 %v143
    %v322 = vunpack.c.l.b16 %v144
    %v323 = vunpack.c.h.b16 %v144
    %v324 = vunpack.c.l.b16 %v145
    %v325 = vunpack.c.h.b16 %v145
    %v326 = vunpack.c.l.b16 %v146
    %v327 = vunpack.c.h.b16 %v146
    %v328 = vunpack.c.l.b16 %v147
    %v329 = vunpack.c.h.b16 %v147
    %v330 = vunpack.c.l.b16 %v148
    %v331 = vunpack.c.h.b16 %v148
    %v332 = vunpack.c.l.b16 %v149
    %v333 = vunpack.c.h.b16 %v149
    %v334 = vunpack.c.l.b16 %v150
    %v335 = vunpack.c.h.b16 %v150
    %v336 = vunpack.c.l.b16 %v151
    %v337 = vunpack.c.h.b16 %v151
    %v338 = vunpack.c.l.b16 %v152
    %v339 = vunpack.c.h.b16 %v152
    %v340 = vunpack.c.l.b16 %v153
    %v341 = vunpack.c.h.b16 %v153
    %v342 = vunpack.c.l.b16 %v154
    %v343 = vunpack.c.h.b16 %v154
    %v344 = vunpack.c.l.b16 %v155
    %v345 = vunpack.c.h.b16 %v155
    %v346 = vunpack.c.l.b16 %v156
    %v347 = vunpack.c.h.b16 %v156
    %v348 = vunpack.c.l.b16 %v157
    %v349 = vunpack.c.h.b16 %v157
    %v350 = vpack.c.b16 %v230, %v222
    %v351 = vpack.c.b16 %v231, %v223
    %v352 = vpack.c.b16 %v232, %v224
    %v353 = vpack.c.b16 %v233, %v225
    %v354 = vpack.c.b16 %v234, %v226
    %v355 = vpack.c.b16 %v235, %v227
    %v356 = vpack.c.b16 %v236, %v228
    %v357 = vpack.c.b16 %v237, %v229
    %v358 = vpack.c.b16 %v246, %v238
    %v359 = vpack.c.b16 %v247, %v239
    %v360 = vpack.c.b16 %v248, %v240
    %v361 = vpack.c.b16 %v249, %v241
    %v362 = vpack.c.b16 %v250, %v242
    %v363 = vpack.c.b16 %v251, %v243
    %v364 = vpack.c.b16 %v252, %v244
    %v365 = vpack.c.b16 %v253, %v245
    %v366 = vpack.c.b16 %v262, %v254
    %v367 = vpack.c.b16 %v263, %v255
    %v368 = vpack.c.b16 %v264, %v256
    %v369 = vpack.c.b16 %v265, %v257
    %v370 = vpack.c.b16 %v266, %v258
    %v371 = vpack.c.b16 %v267, %v259
    %v372 = vpack.c.b16 %v268, %v260
    %v373 = vpack.c.b16 %v269, %v261
    %v374 = vpack.c.b16 %v278, %v270
    %v375 = vpack.c.b16 %v279, %v271
    %v376 = vpack.c.b16 %v280, %v272
    %v377 = vpack.c.b16 %v281, %v273
    %v378 = vpack.c.b16 %v282, %v274
    %v379 = vpack.c.b16 %v283, %v275
    %v380 = vpack.c.b16 %v284, %v276
    %v381 = vpack.c.b16 %v285, %v277
    %v382 = vpack.c.b16 %v294, %v286
    %v383 = vpack.c.b16 %v295, %v287
    %v384 = vpack.c.b16 %v296, %v288
    %v385 = vpack.c.b16 %v297, %v289
    %v386 = vpack.c.b16 %v298, %v290
    %v387 = vpack.c.b16 %v299, %v291
    %v388 = vpack.c.b16 %v300, %v292
    %v389 = vpack.c.b16 %v301, %v293
    %v390 = vpack.c.b16 %v310, %v302
    %v391 = vpack.c.b16 %v311, %v303
    %v392 = vpack.c.b16 %v312, %v304
    %v393 = vpack.c.b16 %v313, %v305
    %v394 = vpack.c.b16 %v314, %v306
    %v395 = vpack.c.b16 %v315, %v307
    %v396 = vpack.c.b16 %v316, %v308
    %v397 = vpack.c.b16 %v317, %v309
    %v398 = vpack.c.b16 %v326, %v318
    %v399 = vpack.c.b16 %v327, %v319
    %v400 = vpack.c.b16 %v328, %v320
    %v401 = vpack.c.b16 %v329, %v321
    %v402 = vpack.c.b16 %v330, %v322
    %v403 = vpack.c.b16 %v331, %v323
    %v404 = vpack.c.b16 %v332, %v324
    %v405 = vpack.c.b16 %v333, %v325
    %v406 = vpack.c.b16 %v342, %v334
    %v407 = vpack.c.b16 %v343, %v335
    %v408 = vpack.c.b16 %v344, %v336
    %v409 = vpack.c.b16 %v345, %v337
    %v410 = vpack.c.b16 %v346, %v338
    %v411 = vpack.c.b16 %v347, %v339
    %v412 = vpack.c.b16 %v348, %v340
    %v413 = vpack.c.b16 %v349, %v341
    %478 = vmatprep.subr.bf16.mxu0 %v351
    %479 = vmatpush1.bf16.msra.mxu0 %v350
    %480 = vmatprep.subr.bf16.mxu0 %v359
    %481 = vmatpush1.bf16.msra.mxu0 %v358
    %482 = vmatprep.subr.bf16.mxu0 %v367
    %483 = vmatpush1.bf16.msra.mxu0 %v366
    %484 = vmatprep.subr.bf16.mxu0 %v375
    %485 = vmatpush1.bf16.msra.mxu0 %v374
    %486 = vmatprep.subr.bf16.mxu0 %v383
    %487 = vmatpush1.bf16.msra.mxu0 %v382
    %488 = vmatprep.subr.bf16.mxu0 %v391
    %489 = vmatpush1.bf16.msra.mxu0 %v390
    %490 = vmatprep.subr.bf16.mxu0 %v399
    %491 = vmatpush1.bf16.msra.mxu0 %v398
    %492 = vmatprep.subr.bf16.mxu0 %v407
    %493 = vmatpush1.bf16.msra.mxu0 %v406
    %494 = vmatprep.subr.bf16.mxu0 0
    %495 = vmatpush1.bf16.msra.mxu0 0
    %496 = vmatprep.subr.bf16.mxu0 0
    %497 = vmatpush1.bf16.msra.mxu0 0
    %498 = vmatprep.subr.bf16.mxu0 0
    %499 = vmatpush1.bf16.msra.mxu0 0
    %500 = vmatprep.subr.bf16.mxu0 0
    %501 = vmatpush1.bf16.msra.mxu0 0
    %502 = vmatprep.subr.bf16.mxu0 0
    %503 = vmatpush1.bf16.msra.mxu0 0
    %504 = vmatprep.subr.bf16.mxu0 0
    %505 = vmatpush1.bf16.msra.mxu0 0
    %506 = vmatprep.subr.bf16.mxu0 0
    %507 = vmatpush1.bf16.msra.mxu0 0
    %508 = vmatprep.subr.bf16.mxu0 0
    %509 = vmatpush1.bf16.msra.mxu0 0
    %510 = vmatprep.mubr.bf16.mxu0 0
    %511 = vmatmul.mubr.bf16.gmra.mrb[0].mxu0 %v93
    %v512 = vpop.f32.mrb[0].mxu0
    %v513 = vadd.f32 0.0, %v512
    %v514 = vpop.f32.mrb[0].mxu0
    %v515 = vadd.f32 0.0, %v514
    %v516 = vpop.f32.mrb[0].mxu0
    %v517 = vpop.f32.mrb[0].mxu0
    %518 = vdwg.mxu0
    %519 = vmatprep.subr.bf16.mxu0 %v353
    %520 = vmatpush1.bf16.msra.mxu0 %v352
    %521 = vmatprep.subr.bf16.mxu0 %v361
    %522 = vmatpush1.bf16.msra.mxu0 %v360
    %523 = vmatprep.subr.bf16.mxu0 %v369
    %524 = vmatpush1.bf16.msra.mxu0 %v368
    %525 = vmatprep.subr.bf16.mxu0 %v377
    %526 = vmatpush1.bf16.msra.mxu0 %v376
    %527 = vmatprep.subr.bf16.mxu0 %v385
    %528 = vmatpush1.bf16.msra.mxu0 %v384
    %529 = vmatprep.subr.bf16.mxu0 %v393
    %530 = vmatpush1.bf16.msra.mxu0 %v392
    %531 = vmatprep.subr.bf16.mxu0 %v401
    %532 = vmatpush1.bf16.msra.mxu0 %v400
    %533 = vmatprep.subr.bf16.mxu0 %v409
    %534 = vmatpush1.bf16.msra.mxu0 %v408
    %535 = vmatprep.subr.bf16.mxu0 0
    %536 = vmatpush1.bf16.msra.mxu0 0
    %537 = vmatprep.subr.bf16.mxu0 0
    %538 = vmatpush1.bf16.msra.mxu0 0
    %539 = vmatprep.subr.bf16.mxu0 0
    %540 = vmatpush1.bf16.msra.mxu0 0
    %541 = vmatprep.subr.bf16.mxu0 0
    %542 = vmatpush1.bf16.msra.mxu0 0
    %543 = vmatprep.subr.bf16.mxu0 0
    %544 = vmatpush1.bf16.msra.mxu0 0
    %545 = vmatprep.subr.bf16.mxu0 0
    %546 = vmatpush1.bf16.msra.mxu0 0
    %547 = vmatprep.subr.bf16.mxu0 0
    %548 = vmatpush1.bf16.msra.mxu0 0
    %549 = vmatprep.subr.bf16.mxu0 0
    %550 = vmatpush1.bf16.msra.mxu0 0
    %551 = vmatprep.mubr.bf16.mxu0 0
    %552 = vmatmul.mubr.bf16.gmra.mrb[0].mxu0 %v93
    %v553 = vpop.f32.mrb[0].mxu0
    %v554 = vadd.f32 0.0, %v553
    %v555 = vpop.f32.mrb[0].mxu0
    %v556 = vadd.f32 0.0, %v555
    %v557 = vpop.f32.mrb[0].mxu0
    %v558 = vpop.f32.mrb[0].mxu0
    %559 = vdwg.mxu0
    %560 = vmatprep.subr.bf16.mxu0 %v355
    %561 = vmatpush1.bf16.msra.mxu0 %v354
    %562 = vmatprep.subr.bf16.mxu0 %v363
    %563 = vmatpush1.bf16.msra.mxu0 %v362
    %564 = vmatprep.subr.bf16.mxu0 %v371
    %565 = vmatpush1.bf16.msra.mxu0 %v370
    %566 = vmatprep.subr.bf16.mxu0 %v379
    %567 = vmatpush1.bf16.msra.mxu0 %v378
    %568 = vmatprep.subr.bf16.mxu0 %v387
    %569 = vmatpush1.bf16.msra.mxu0 %v386
    %570 = vmatprep.subr.bf16.mxu0 %v395
    %571 = vmatpush1.bf16.msra.mxu0 %v394
    %572 = vmatprep.subr.bf16.mxu0 %v403
    %573 = vmatpush1.bf16.msra.mxu0 %v402
    %574 = vmatprep.subr.bf16.mxu0 %v411
    %575 = vmatpush1.bf16.msra.mxu0 %v410
    %576 = vmatprep.subr.bf16.mxu0 0
    %577 = vmatpush1.bf16.msra.mxu0 0
    %578 = vmatprep.subr.bf16.mxu0 0
    %579 = vmatpush1.bf16.msra.mxu0 0
    %580 = vmatprep.subr.bf16.mxu0 0
    %581 = vmatpush1.bf16.msra.mxu0 0
    %582 = vmatprep.subr.bf16.mxu0 0
    %583 = vmatpush1.bf16.msra.mxu0 0
    %584 = vmatprep.subr.bf16.mxu0 0
    %585 = vmatpush1.bf16.msra.mxu0 0
    %586 = vmatprep.subr.bf16.mxu0 0
    %587 = vmatpush1.bf16.msra.mxu0 0
    %588 = vmatprep.subr.bf16.mxu0 0
    %589 = vmatpush1.bf16.msra.mxu0 0
    %590 = vmatprep.subr.bf16.mxu0 0
    %591 = vmatpush1.bf16.msra.mxu0 0
    %592 = vmatprep.mubr.bf16.mxu0 0
    %593 = vmatmul.mubr.bf16.gmra.mrb[0].mxu0 %v93
    %v594 = vpop.f32.mrb[0].mxu0
    %v595 = vadd.f32 0.0, %v594
    %v596 = vpop.f32.mrb[0].mxu0
    %v597 = vadd.f32 0.0, %v596
    %v598 = vpop.f32.mrb[0].mxu0
    %v599 = vpop.f32.mrb[0].mxu0
    %600 = vdwg.mxu0
    %601 = vmatprep.subr.bf16.mxu0 %v357
    %602 = vmatpush1.bf16.msra.mxu0 %v356
    %603 = vmatprep.subr.bf16.mxu0 %v365
    %604 = vmatpush1.bf16.msra.mxu0 %v364
    %605 = vmatprep.subr.bf16.mxu0 %v373
    %606 = vmatpush1.bf16.msra.mxu0 %v372
    %607 = vmatprep.subr.bf16.mxu0 %v381
    %608 = vmatpush1.bf16.msra.mxu0 %v380
    %609 = vmatprep.subr.bf16.mxu0 %v389
    %610 = vmatpush1.bf16.msra.mxu0 %v388
    %611 = vmatprep.subr.bf16.mxu0 %v397
    %612 = vmatpush1.bf16.msra.mxu0 %v396
    %613 = vmatprep.subr.bf16.mxu0 %v405
    %614 = vmatpush1.bf16.msra.mxu0 %v404
    %615 = vmatprep.subr.bf16.mxu0 %v413
    %616 = vmatpush1.bf16.msra.mxu0 %v412
    %617 = vmatprep.subr.bf16.mxu0 0
    %618 = vmatpush1.bf16.msra.mxu0 0
    %619 = vmatprep.subr.bf16.mxu0 0
    %620 = vmatpush1.bf16.msra.mxu0 0
    %621 = vmatprep.subr.bf16.mxu0 0
    %622 = vmatpush1.bf16.msra.mxu0 0
    %623 = vmatprep.subr.bf16.mxu0 0
    %624 = vmatpush1.bf16.msra.mxu0 0
    %625 = vmatprep.subr.bf16.mxu0 0
    %626 = vmatpush1.bf16.msra.mxu0 0
    %627 = vmatprep.subr.bf16.mxu0 0
    %628 = vmatpush1.bf16.msra.mxu0 0
    %629 = vmatprep.subr.bf16.mxu0 0
    %630 = vmatpush1.bf16.msra.mxu0 0
    %631 = vmatprep.subr.bf16.mxu0 0
    %632 = vmatpush1.bf16.msra.mxu0 0
    %633 = vmatprep.mubr.bf16.mxu0 0
    %634 = vmatmul.mubr.bf16.gmra.mrb[0].mxu0 %v93
    %v635 = vpop.f32.mrb[0].mxu0
    %v636 = vadd.f32 0.0, %v635
    %v637 = vpop.f32.mrb[0].mxu0
    %v638 = vadd.f32 0.0, %v637
    %v639 = vpop.f32.mrb[0].mxu0
    %v640 = vpop.f32.mrb[0].mxu0
    %641 = vdwg.mxu0
    %v642 = vrot.slane %v513, 4
    %v643 = vadd.f32 %v513, %v642
    %v644 = vrot.slane %v643, 2
    %v645 = vadd.f32 %v643, %v644
    %v646 = vrot.slane %v645, 1
    %v647 = vadd.f32 %v645, %v646
    %v648 = vrot.slane %v515, 4
    %v649 = vadd.f32 %v515, %v648
    %v650 = vrot.slane %v649, 2
    %v651 = vadd.f32 %v649, %v650
    %v652 = vrot.slane %v651, 1
    %v653 = vadd.f32 %v651, %v652
    %v654 = vrot.slane %v554, 4
    %v655 = vadd.f32 %v554, %v654
    %v656 = vrot.slane %v655, 2
    %v657 = vadd.f32 %v655, %v656
    %v658 = vrot.slane %v657, 1
    %v659 = vadd.f32 %v657, %v658
    %v660 = vrot.slane %v556, 4
    %v661 = vadd.f32 %v556, %v660
    %v662 = vrot.slane %v661, 2
    %v663 = vadd.f32 %v661, %v662
    %v664 = vrot.slane %v663, 1
    %v665 = vadd.f32 %v663, %v664
    %v666 = vrot.slane %v595, 4
    %v667 = vadd.f32 %v595, %v666
    %v668 = vrot.slane %v667, 2
    %v669 = vadd.f32 %v667, %v668
    %v670 = vrot.slane %v669, 1
    %v671 = vadd.f32 %v669, %v670
    %v672 = vrot.slane %v597, 4
    %v673 = vadd.f32 %v597, %v672
    %v674 = vrot.slane %v673, 2
    %v675 = vadd.f32 %v673, %v674
    %v676 = vrot.slane %v675, 1
    %v677 = vadd.f32 %v675, %v676
    %v678 = vrot.slane %v636, 4
    %v679 = vadd.f32 %v636, %v678
    %v680 = vrot.slane %v679, 2
    %v681 = vadd.f32 %v679, %v680
    %v682 = vrot.slane %v681, 1
    %v683 = vadd.f32 %v681, %v682
    %v684 = vrot.slane %v638, 4
    %v685 = vadd.f32 %v638, %v684
    %v686 = vrot.slane %v685, 2
    %v687 = vadd.f32 %v685, %v686
    %v688 = vrot.slane %v687, 1
    %v689 = vadd.f32 %v687, %v688
    %v690 = vrcp.pop 8.0
    %v691 = vmul.f32 %v647, %v690
    %v692 = vmul.f32 %v653, %v690
    %v693 = vmul.f32 %v659, %v690
    %v694 = vmul.f32 %v665, %v690
    %v695 = vmul.f32 %v671, %v690
    %v696 = vmul.f32 %v677, %v690
    %v697 = vmul.f32 %v683, %v690
    %v698 = vmul.f32 %v689, %v690
    %v699 = vmul.f32 %v513, %v513
    %v700 = vmul.f32 %v515, %v515
    %v701 = vmul.f32 %v554, %v554
    %v702 = vmul.f32 %v556, %v556
    %v703 = vmul.f32 %v595, %v595
    %v704 = vmul.f32 %v597, %v597
    %v705 = vmul.f32 %v636, %v636
    %v706 = vmul.f32 %v638, %v638
    %v707 = vrot.slane %v699, 4
    %v708 = vadd.f32 %v699, %v707
    %v709 = vrot.slane %v708, 2
    %v710 = vadd.f32 %v708, %v709
    %v711 = vrot.slane %v710, 1
    %v712 = vadd.f32 %v710, %v711
    %v713 = vrot.slane %v700, 4
    %v714 = vadd.f32 %v700, %v713
    %v715 = vrot.slane %v714, 2
    %v716 = vadd.f32 %v714, %v715
    %v717 = vrot.slane %v716, 1
    %v718 = vadd.f32 %v716, %v717
    %v719 = vrot.slane %v701, 4
    %v720 = vadd.f32 %v701, %v719
    %v721 = vrot.slane %v720, 2
    %v722 = vadd.f32 %v720, %v721
    %v723 = vrot.slane %v722, 1
    %v724 = vadd.f32 %v722, %v723
    %v725 = vrot.slane %v702, 4
    %v726 = vadd.f32 %v702, %v725
    %v727 = vrot.slane %v726, 2
    %v728 = vadd.f32 %v726, %v727
    %v729 = vrot.slane %v728, 1
    %v730 = vadd.f32 %v728, %v729
    %v731 = vrot.slane %v703, 4
    %v732 = vadd.f32 %v703, %v731
    %v733 = vrot.slane %v732, 2
    %v734 = vadd.f32 %v732, %v733
    %v735 = vrot.slane %v734, 1
    %v736 = vadd.f32 %v734, %v735
    %v737 = vrot.slane %v704, 4
    %v738 = vadd.f32 %v704, %v737
    %v739 = vrot.slane %v738, 2
    %v740 = vadd.f32 %v738, %v739
    %v741 = vrot.slane %v740, 1
    %v742 = vadd.f32 %v740, %v741
    %v743 = vrot.slane %v705, 4
    %v744 = vadd.f32 %v705, %v743
    %v745 = vrot.slane %v744, 2
    %v746 = vadd.f32 %v744, %v745
    %v747 = vrot.slane %v746, 1
    %v748 = vadd.f32 %v746, %v747
    %v749 = vrot.slane %v706, 4
    %v750 = vadd.f32 %v706, %v749
    %v751 = vrot.slane %v750, 2
    %v752 = vadd.f32 %v750, %v751
    %v753 = vrot.slane %v752, 1
    %v754 = vadd.f32 %v752, %v753
    %v755 = vmul.f32 %v712, %v690
    %v756 = vmul.f32 %v718, %v690
    %v757 = vmul.f32 %v724, %v690
    %v758 = vmul.f32 %v730, %v690
    %v759 = vmul.f32 %v736, %v690
    %v760 = vmul.f32 %v742, %v690
    %v761 = vmul.f32 %v748, %v690
    %v762 = vmul.f32 %v754, %v690
    %v763 = vmul.f32 %v691, %v691
    %v764 = vmul.f32 %v692, %v692
    %v765 = vmul.f32 %v693, %v693
    %v766 = vmul.f32 %v694, %v694
    %v767 = vmul.f32 %v695, %v695
    %v768 = vmul.f32 %v696, %v696
    %v769 = vmul.f32 %v697, %v697
    %v770 = vmul.f32 %v698, %v698
    %v771 = vsub.f32 %v755, %v763
    %v772 = vsub.f32 %v756, %v764
    %v773 = vsub.f32 %v757, %v765
    %v774 = vsub.f32 %v758, %v766
    %v775 = vsub.f32 %v759, %v767
    %v776 = vsub.f32 %v760, %v768
    %v777 = vsub.f32 %v761, %v769
    %v778 = vsub.f32 %v762, %v770
    %v779 = vld [vmem:[#allocation7] ss:$2 sm:$0xff]
    %v780 = vadd.f32 %v771, 1e-05
    %v781 = vadd.f32 %v772, 1e-05
    %v782 = vadd.f32 %v773, 1e-05
    %v783 = vadd.f32 %v774, 1e-05
    %v784 = vadd.f32 %v775, 1e-05
    %v785 = vadd.f32 %v776, 1e-05
    %v786 = vadd.f32 %v777, 1e-05
    %v787 = vadd.f32 %v778, 1e-05
    %v788 = vrsqrt.pop %v780
    %v789 = vrsqrt.pop %v781
    %v790 = vrsqrt.pop %v782
    %v791 = vrsqrt.pop %v783
    %v792 = vrsqrt.pop %v784
    %v793 = vrsqrt.pop %v785
    %v794 = vrsqrt.pop %v786
    %v795 = vrsqrt.pop %v787
    %v804 = vcombine.low %v788, %v789
    %v805 = vcombine.low %v790, %v791
    %v806 = vcombine.low %v792, %v793
    %v807 = vcombine.low %v794, %v795
    %v809 = vunpack.c.l.s4 1966171168
    %v810 = vunpack.c.0.s8 %v809
    %v811 = vlaneseq
    %v812 = vshrl.u32 %v811, 7
    %v813 = vsub.s32 %v810, %v812
    %v814 = vrot.slane %v804, %v813
    %v816 = vunpack.c.l.s4 1966171168
    %v817 = vunpack.c.0.s8 %v816
    %v818 = vlaneseq
    %v819 = vshrl.u32 %v818, 7
    %v820 = vsub.s32 %v817, %v819
    %v821 = vrot.slane %v805, %v820
    %v823 = vunpack.c.l.s4 1966171168
    %v824 = vunpack.c.0.s8 %v823
    %v825 = vlaneseq
    %v826 = vshrl.u32 %v825, 7
    %v827 = vsub.s32 %v824, %v826
    %v828 = vrot.slane %v806, %v827
    %v830 = vunpack.c.l.s4 1966171168
    %v831 = vunpack.c.0.s8 %v830
    %v832 = vlaneseq
    %v833 = vshrl.u32 %v832, 7
    %v834 = vsub.s32 %v831, %v833
    %v835 = vrot.slane %v807, %v834
    %v836 = vcombine.low %v814, %v821
    %v837 = vcombine.low %v828, %v835
    %v839 = vunpack.c.l.s4 1966171168
    %v840 = vunpack.c.0.s8 %v839
    %v841 = vlaneseq
    %v842 = vshrl.u32 %v841, 7
    %v843 = vsub.s32 %v840, %v842
    %v844 = vrot.slane %v836, %v843
    %v846 = vunpack.c.l.s4 1966171168
    %v847 = vunpack.c.0.s8 %v846
    %v848 = vlaneseq
    %v849 = vshrl.u32 %v848, 7
    %v850 = vsub.s32 %v847, %v849
    %v851 = vrot.slane %v837, %v850
    %v852 = vcombine.low %v844, %v851
    %v854 = vmul.f32 %v779, %v852
    %s855 = scalar_lea.vmem [#allocation7], 1
    %v856 = vld [vmem:[%s855] ss:$2 sm:$0xff]
    %v858 = vlaneseq
    %v859 = vshrl.u32 %v858, 7
    %v860 = vsub.s32 0, %v859
    %v861 = vrot.slane %v854, %v860
    %v862 = vlaneseq
    %v863 = vshrl.u32 %v862, 7
    %v864 = vsub.s32 1, %v863
    %v865 = vrot.slane %v854, %v864
    %v866 = vlaneseq
    %v867 = vshrl.u32 %v866, 7
    %v868 = vsub.s32 2, %v867
    %v869 = vrot.slane %v854, %v868
    %v870 = vlaneseq
    %v871 = vshrl.u32 %v870, 7
    %v872 = vsub.s32 3, %v871
    %v873 = vrot.slane %v854, %v872
    %v874 = vlaneseq
    %v875 = vshrl.u32 %v874, 7
    %v876 = vsub.s32 4, %v875
    %v877 = vrot.slane %v854, %v876
    %v878 = vlaneseq
    %v879 = vshrl.u32 %v878, 7
    %v880 = vsub.s32 5, %v879
    %v881 = vrot.slane %v854, %v880
    %v882 = vlaneseq
    %v883 = vshrl.u32 %v882, 7
    %v884 = vsub.s32 6, %v883
    %v885 = vrot.slane %v854, %v884
    %v886 = vlaneseq
    %v887 = vshrl.u32 %v886, 7
    %v888 = vsub.s32 7, %v887
    %v889 = vrot.slane %v854, %v888
    %v898 = vmul.f32 %v691, %v861
    %v899 = vmul.f32 %v692, %v865
    %v900 = vmul.f32 %v693, %v869
    %v901 = vmul.f32 %v694, %v873
    %v902 = vmul.f32 %v695, %v877
    %v903 = vmul.f32 %v696, %v881
    %v904 = vmul.f32 %v697, %v885
    %v905 = vmul.f32 %v698, %v889
    %v914 = vcombine.low %v898, %v899
    %v915 = vcombine.low %v900, %v901
    %v916 = vcombine.low %v902, %v903
    %v917 = vcombine.low %v904, %v905
    %v919 = vunpack.c.l.s4 1966171168
    %v920 = vunpack.c.0.s8 %v919
    %v921 = vlaneseq
    %v922 = vshrl.u32 %v921, 7
    %v923 = vsub.s32 %v920, %v922
    %v924 = vrot.slane %v914, %v923
    %v926 = vunpack.c.l.s4 1966171168
    %v927 = vunpack.c.0.s8 %v926
    %v928 = vlaneseq
    %v929 = vshrl.u32 %v928, 7
    %v930 = vsub.s32 %v927, %v929
    %v931 = vrot.slane %v915, %v930
    %v933 = vunpack.c.l.s4 1966171168
    %v934 = vunpack.c.0.s8 %v933
    %v935 = vlaneseq
    %v936 = vshrl.u32 %v935, 7
    %v937 = vsub.s32 %v934, %v936
    %v938 = vrot.slane %v916, %v937
    %v940 = vunpack.c.l.s4 1966171168
    %v941 = vunpack.c.0.s8 %v940
    %v942 = vlaneseq
    %v943 = vshrl.u32 %v942, 7
    %v944 = vsub.s32 %v941, %v943
    %v945 = vrot.slane %v917, %v944
    %v946 = vcombine.low %v924, %v931
    %v947 = vcombine.low %v938, %v945
    %v949 = vunpack.c.l.s4 1966171168
    %v950 = vunpack.c.0.s8 %v949
    %v951 = vlaneseq
    %v952 = vshrl.u32 %v951, 7
    %v953 = vsub.s32 %v950, %v952
    %v954 = vrot.slane %v946, %v953
    %v956 = vunpack.c.l.s4 1966171168
    %v957 = vunpack.c.0.s8 %v956
    %v958 = vlaneseq
    %v959 = vshrl.u32 %v958, 7
    %v960 = vsub.s32 %v957, %v959
    %v961 = vrot.slane %v947, %v960
    %v962 = vcombine.low %v954, %v961
    %v964 = vsub.f32 %v856, %v962
    %v965 = vmul.f32 %v513, %v861
    %v966 = vmul.f32 %v515, %v865
    %v967 = vmul.f32 %v554, %v869
    %v968 = vmul.f32 %v556, %v873
    %v969 = vmul.f32 %v595, %v877
    %v970 = vmul.f32 %v597, %v881
    %v971 = vmul.f32 %v636, %v885
    %v972 = vmul.f32 %v638, %v889
    %v974 = vlaneseq
    %v975 = vshrl.u32 %v974, 7
    %v976 = vsub.s32 0, %v975
    %v977 = vrot.slane %v964, %v976
    %v978 = vlaneseq
    %v979 = vshrl.u32 %v978, 7
    %v980 = vsub.s32 1, %v979
    %v981 = vrot.slane %v964, %v980
    %v982 = vlaneseq
    %v983 = vshrl.u32 %v982, 7
    %v984 = vsub.s32 2, %v983
    %v985 = vrot.slane %v964, %v984
    %v986 = vlaneseq
    %v987 = vshrl.u32 %v986, 7
    %v988 = vsub.s32 3, %v987
    %v989 = vrot.slane %v964, %v988
    %v990 = vlaneseq
    %v991 = vshrl.u32 %v990, 7
    %v992 = vsub.s32 4, %v991
    %v993 = vrot.slane %v964, %v992
    %v994 = vlaneseq
    %v995 = vshrl.u32 %v994, 7
    %v996 = vsub.s32 5, %v995
    %v997 = vrot.slane %v964, %v996
    %v998 = vlaneseq
    %v999 = vshrl.u32 %v998, 7
    %v1000 = vsub.s32 6, %v999
    %v1001 = vrot.slane %v964, %v1000
    %v1002 = vlaneseq
    %v1003 = vshrl.u32 %v1002, 7
    %v1004 = vsub.s32 7, %v1003
    %v1005 = vrot.slane %v964, %v1004
    %v1014 = vadd.f32 %v965, %v977
    %v1015 = vadd.f32 %v966, %v981
    %v1016 = vadd.f32 %v967, %v985
    %v1017 = vadd.f32 %v968, %v989
    %v1018 = vadd.f32 %v969, %v993
    %v1019 = vadd.f32 %v970, %v997
    %v1020 = vadd.f32 %v971, %v1001
    %v1021 = vadd.f32 %v972, %v1005
    %v1022 = vmax.f32 %v1014, 0.0
    %v1023 = vmax.f32 %v1015, 0.0
    %v1024 = vmax.f32 %v1016, 0.0
    %v1025 = vmax.f32 %v1017, 0.0
    %v1026 = vmax.f32 %v1018, 0.0
    %v1027 = vmax.f32 %v1019, 0.0
    %v1028 = vmax.f32 %v1020, 0.0
    %v1029 = vmax.f32 %v1021, 0.0
    %v1030 = vpack.c.bf16 %v1022, %v1022
    %v1031 = vpack.c.bf16 %v1023, %v1023
    %v1032 = vpack.c.bf16 %v1024, %v1024
    %v1033 = vpack.c.bf16 %v1025, %v1025
    %v1034 = vpack.c.bf16 %v1026, %v1026
    %v1035 = vpack.c.bf16 %v1027, %v1027
    %v1036 = vpack.c.bf16 %v1028, %v1028
    %v1037 = vpack.c.bf16 %v1029, %v1029
    %v1038 = vld [vmem:[#allocation8] sm:$0xff]
    %v1039 = vld [vmem:[#allocation8 + $0x8] sm:$0xff]
    %v1040 = vld [vmem:[#allocation8 + $0x10] sm:$0xff]
    %v1041 = vld [vmem:[#allocation8 + $0x18] sm:$0xff]
    %v1042 = vld [vmem:[#allocation8 + $0x20] sm:$0xff]
    %v1043 = vld [vmem:[#allocation8 + $0x28] sm:$0xff]
    %v1044 = vld [vmem:[#allocation8 + $0x30] sm:$0xff]
    %v1045 = vld [vmem:[#allocation8 + $0x38] sm:$0xff]
    %v1046 = vld [vmem:[#allocation8 + $0x40] sm:$0xff]
    %v1047 = vld [vmem:[#allocation8 + $0x48] sm:$0xff]
    %v1048 = vld [vmem:[#allocation8 + $0x50] sm:$0xff]
    %v1049 = vld [vmem:[#allocation8 + $0x58] sm:$0xff]
    %v1050 = vld [vmem:[#allocation8 + $0x60] sm:$0xff]
    %v1051 = vld [vmem:[#allocation8 + $0x68] sm:$0xff]
    %v1052 = vld [vmem:[#allocation8 + $0x70] sm:$0xff]
    %v1053 = vld [vmem:[#allocation8 + $0x78] sm:$0xff]
    %v1054 = vld [vmem:[#allocation8 + $0x80] sm:$0xff]
    %v1055 = vld [vmem:[#allocation8 + $0x88] sm:$0xff]
    %v1056 = vld [vmem:[#allocation8 + $0x90] sm:$0xff]
    %v1057 = vld [vmem:[#allocation8 + $0x98] sm:$0xff]
    %v1058 = vld [vmem:[#allocation8 + $0xa0] sm:$0xff]
    %v1059 = vld [vmem:[#allocation8 + $0xa8] sm:$0xff]
    %v1060 = vld [vmem:[#allocation8 + $0xb0] sm:$0xff]
    %v1061 = vld [vmem:[#allocation8 + $0xb8] sm:$0xff]
    %v1062 = vld [vmem:[#allocation8 + $0xc0] sm:$0xff]
    %v1063 = vld [vmem:[#allocation8 + $0xc8] sm:$0xff]
    %v1064 = vld [vmem:[#allocation8 + $0xd0] sm:$0xff]
    %v1065 = vld [vmem:[#allocation8 + $0xd8] sm:$0xff]
    %v1066 = vld [vmem:[#allocation8 + $0xe0] sm:$0xff]
    %v1067 = vld [vmem:[#allocation8 + $0xe8] sm:$0xff]
    %v1068 = vld [vmem:[#allocation8 + $0xf0] sm:$0xff]
    %v1069 = vld [vmem:[#allocation8 + $0xf8] sm:$0xff]
    %v1070 = vld [vmem:[#allocation8 + $0x100] sm:$0xff]
    %v1071 = vld [vmem:[#allocation8 + $0x108] sm:$0xff]
    %v1072 = vld [vmem:[#allocation8 + $0x110] sm:$0xff]
    %v1073 = vld [vmem:[#allocation8 + $0x118] sm:$0xff]
    %v1074 = vld [vmem:[#allocation8 + $0x120] sm:$0xff]
    %v1075 = vld [vmem:[#allocation8 + $0x128] sm:$0xff]
    %v1076 = vld [vmem:[#allocation8 + $0x130] sm:$0xff]
    %v1077 = vld [vmem:[#allocation8 + $0x138] sm:$0xff]
    %v1078 = vld [vmem:[#allocation8 + $0x140] sm:$0xff]
    %v1079 = vld [vmem:[#allocation8 + $0x148] sm:$0xff]
    %v1080 = vld [vmem:[#allocation8 + $0x150] sm:$0xff]
    %v1081 = vld [vmem:[#allocation8 + $0x158] sm:$0xff]
    %v1082 = vld [vmem:[#allocation8 + $0x160] sm:$0xff]
    %v1083 = vld [vmem:[#allocation8 + $0x168] sm:$0xff]
    %v1084 = vld [vmem:[#allocation8 + $0x170] sm:$0xff]
    %v1085 = vld [vmem:[#allocation8 + $0x178] sm:$0xff]
    %v1086 = vld [vmem:[#allocation8 + $0x180] sm:$0xff]
    %v1087 = vld [vmem:[#allocation8 + $0x188] sm:$0xff]
    %v1088 = vld [vmem:[#allocation8 + $0x190] sm:$0xff]
    %v1089 = vld [vmem:[#allocation8 + $0x198] sm:$0xff]
    %v1090 = vld [vmem:[#allocation8 + $0x1a0] sm:$0xff]
    %v1091 = vld [vmem:[#allocation8 + $0x1a8] sm:$0xff]
    %v1092 = vld [vmem:[#allocation8 + $0x1b0] sm:$0xff]
    %v1093 = vld [vmem:[#allocation8 + $0x1b8] sm:$0xff]
    %v1094 = vld [vmem:[#allocation8 + $0x1c0] sm:$0xff]
    %v1095 = vld [vmem:[#allocation8 + $0x1c8] sm:$0xff]
    %v1096 = vld [vmem:[#allocation8 + $0x1d0] sm:$0xff]
    %v1097 = vld [vmem:[#allocation8 + $0x1d8] sm:$0xff]
    %v1098 = vld [vmem:[#allocation8 + $0x1e0] sm:$0xff]
    %v1099 = vld [vmem:[#allocation8 + $0x1e8] sm:$0xff]
    %v1100 = vld [vmem:[#allocation8 + $0x1f0] sm:$0xff]
    %v1101 = vld [vmem:[#allocation8 + $0x1f8] sm:$0xff]
    %v1102 = vld [vmem:[#allocation8 + $0x200] sm:$0xff]
    %v1103 = vld [vmem:[#allocation8 + $0x208] sm:$0xff]
    %v1104 = vld [vmem:[#allocation8 + $0x210] sm:$0xff]
    %v1105 = vld [vmem:[#allocation8 + $0x218] sm:$0xff]
    %v1106 = vld [vmem:[#allocation8 + $0x220] sm:$0xff]
    %v1107 = vld [vmem:[#allocation8 + $0x228] sm:$0xff]
    %v1108 = vld [vmem:[#allocation8 + $0x230] sm:$0xff]
    %v1109 = vld [vmem:[#allocation8 + $0x238] sm:$0xff]
    %v1110 = vld [vmem:[#allocation8 + $0x240] sm:$0xff]
    %v1111 = vld [vmem:[#allocation8 + $0x248] sm:$0xff]
    %v1112 = vld [vmem:[#allocation8 + $0x250] sm:$0xff]
    %v1113 = vld [vmem:[#allocation8 + $0x258] sm:$0xff]
    %v1114 = vld [vmem:[#allocation8 + $0x260] sm:$0xff]
    %v1115 = vld [vmem:[#allocation8 + $0x268] sm:$0xff]
    %v1116 = vld [vmem:[#allocation8 + $0x270] sm:$0xff]
    %v1117 = vld [vmem:[#allocation8 + $0x278] sm:$0xff]
    %v1118 = vld [vmem:[#allocation8 + $0x280] sm:$0xff]
    %v1119 = vld [vmem:[#allocation8 + $0x288] sm:$0xff]
    %v1120 = vld [vmem:[#allocation8 + $0x290] sm:$0xff]
    %v1121 = vld [vmem:[#allocation8 + $0x298] sm:$0xff]
    %v1122 = vld [vmem:[#allocation8 + $0x2a0] sm:$0xff]
    %v1123 = vld [vmem:[#allocation8 + $0x2a8] sm:$0xff]
    %v1124 = vld [vmem:[#allocation8 + $0x2b0] sm:$0xff]
    %v1125 = vld [vmem:[#allocation8 + $0x2b8] sm:$0xff]
    %v1126 = vld [vmem:[#allocation8 + $0x2c0] sm:$0xff]
    %v1127 = vld [vmem:[#allocation8 + $0x2c8] sm:$0xff]
    %v1128 = vld [vmem:[#allocation8 + $0x2d0] sm:$0xff]
    %v1129 = vld [vmem:[#allocation8 + $0x2d8] sm:$0xff]
    %v1130 = vld [vmem:[#allocation8 + $0x2e0] sm:$0xff]
    %v1131 = vld [vmem:[#allocation8 + $0x2e8] sm:$0xff]
    %v1132 = vld [vmem:[#allocation8 + $0x2f0] sm:$0xff]
    %v1133 = vld [vmem:[#allocation8 + $0x2f8] sm:$0xff]
    %v1134 = vld [vmem:[#allocation8 + $0x300] sm:$0xff]
    %v1135 = vld [vmem:[#allocation8 + $0x308] sm:$0xff]
    %v1136 = vld [vmem:[#allocation8 + $0x310] sm:$0xff]
    %v1137 = vld [vmem:[#allocation8 + $0x318] sm:$0xff]
    %v1138 = vld [vmem:[#allocation8 + $0x320] sm:$0xff]
    %v1139 = vld [vmem:[#allocation8 + $0x328] sm:$0xff]
    %v1140 = vld [vmem:[#allocation8 + $0x330] sm:$0xff]
    %v1141 = vld [vmem:[#allocation8 + $0x338] sm:$0xff]
    %v1142 = vld [vmem:[#allocation8 + $0x340] sm:$0xff]
    %v1143 = vld [vmem:[#allocation8 + $0x348] sm:$0xff]
    %v1144 = vld [vmem:[#allocation8 + $0x350] sm:$0xff]
    %v1145 = vld [vmem:[#allocation8 + $0x358] sm:$0xff]
    %v1146 = vld [vmem:[#allocation8 + $0x360] sm:$0xff]
    %v1147 = vld [vmem:[#allocation8 + $0x368] sm:$0xff]
    %v1148 = vld [vmem:[#allocation8 + $0x370] sm:$0xff]
    %v1149 = vld [vmem:[#allocation8 + $0x378] sm:$0xff]
    %v1150 = vld [vmem:[#allocation8 + $0x380] sm:$0xff]
    %v1151 = vld [vmem:[#allocation8 + $0x388] sm:$0xff]
    %v1152 = vld [vmem:[#allocation8 + $0x390] sm:$0xff]
    %v1153 = vld [vmem:[#allocation8 + $0x398] sm:$0xff]
    %v1154 = vld [vmem:[#allocation8 + $0x3a0] sm:$0xff]
    %v1155 = vld [vmem:[#allocation8 + $0x3a8] sm:$0xff]
    %v1156 = vld [vmem:[#allocation8 + $0x3b0] sm:$0xff]
    %v1157 = vld [vmem:[#allocation8 + $0x3b8] sm:$0xff]
    %v1158 = vld [vmem:[#allocation8 + $0x3c0] sm:$0xff]
    %v1159 = vld [vmem:[#allocation8 + $0x3c8] sm:$0xff]
    %v1160 = vld [vmem:[#allocation8 + $0x3d0] sm:$0xff]
    %v1161 = vld [vmem:[#allocation8 + $0x3d8] sm:$0xff]
    %v1162 = vld [vmem:[#allocation8 + $0x3e0] sm:$0xff]
    %v1163 = vld [vmem:[#allocation8 + $0x3e8] sm:$0xff]
    %v1164 = vld [vmem:[#allocation8 + $0x3f0] sm:$0xff]
    %v1165 = vld [vmem:[#allocation8 + $0x3f8] sm:$0xff]
    %v1294 = vunpack.c.l.b16 %v1038
    %v1295 = vunpack.c.h.b16 %v1038
    %v1296 = vunpack.c.l.b16 %v1039
    %v1297 = vunpack.c.h.b16 %v1039
    %v1298 = vunpack.c.l.b16 %v1040
    %v1299 = vunpack.c.h.b16 %v1040
    %v1300 = vunpack.c.l.b16 %v1041
    %v1301 = vunpack.c.h.b16 %v1041
    %v1302 = vunpack.c.l.b16 %v1042
    %v1303 = vunpack.c.h.b16 %v1042
    %v1304 = vunpack.c.l.b16 %v1043
    %v1305 = vunpack.c.h.b16 %v1043
    %v1306 = vunpack.c.l.b16 %v1044
    %v1307 = vunpack.c.h.b16 %v1044
    %v1308 = vunpack.c.l.b16 %v1045
    %v1309 = vunpack.c.h.b16 %v1045
    %v1310 = vunpack.c.l.b16 %v1046
    %v1311 = vunpack.c.h.b16 %v1046
    %v1312 = vunpack.c.l.b16 %v1047
    %v1313 = vunpack.c.h.b16 %v1047
    %v1314 = vunpack.c.l.b16 %v1048
    %v1315 = vunpack.c.h.b16 %v1048
    %v1316 = vunpack.c.l.b16 %v1049
    %v1317 = vunpack.c.h.b16 %v1049
    %v1318 = vunpack.c.l.b16 %v1050
    %v1319 = vunpack.c.h.b16 %v1050
    %v1320 = vunpack.c.l.b16 %v1051
    %v1321 = vunpack.c.h.b16 %v1051
    %v1322 = vunpack.c.l.b16 %v1052
    %v1323 = vunpack.c.h.b16 %v1052
    %v1324 = vunpack.c.l.b16 %v1053
    %v1325 = vunpack.c.h.b16 %v1053
    %v1326 = vunpack.c.l.b16 %v1054
    %v1327 = vunpack.c.h.b16 %v1054
    %v1328 = vunpack.c.l.b16 %v1055
    %v1329 = vunpack.c.h.b16 %v1055
    %v1330 = vunpack.c.l.b16 %v1056
    %v1331 = vunpack.c.h.b16 %v1056
    %v1332 = vunpack.c.l.b16 %v1057
    %v1333 = vunpack.c.h.b16 %v1057
    %v1334 = vunpack.c.l.b16 %v1058
    %v1335 = vunpack.c.h.b16 %v1058
    %v1336 = vunpack.c.l.b16 %v1059
    %v1337 = vunpack.c.h.b16 %v1059
    %v1338 = vunpack.c.l.b16 %v1060
    %v1339 = vunpack.c.h.b16 %v1060
    %v1340 = vunpack.c.l.b16 %v1061
    %v1341 = vunpack.c.h.b16 %v1061
    %v1342 = vunpack.c.l.b16 %v1062
    %v1343 = vunpack.c.h.b16 %v1062
    %v1344 = vunpack.c.l.b16 %v1063
    %v1345 = vunpack.c.h.b16 %v1063
    %v1346 = vunpack.c.l.b16 %v1064
    %v1347 = vunpack.c.h.b16 %v1064
    %v1348 = vunpack.c.l.b16 %v1065
    %v1349 = vunpack.c.h.b16 %v1065
    %v1350 = vunpack.c.l.b16 %v1066
    %v1351 = vunpack.c.h.b16 %v1066
    %v1352 = vunpack.c.l.b16 %v1067
    %v1353 = vunpack.c.h.b16 %v1067
    %v1354 = vunpack.c.l.b16 %v1068
    %v1355 = vunpack.c.h.b16 %v1068
    %v1356 = vunpack.c.l.b16 %v1069
    %v1357 = vunpack.c.h.b16 %v1069
    %v1358 = vunpack.c.l.b16 %v1070
    %v1359 = vunpack.c.h.b16 %v1070
    %v1360 = vunpack.c.l.b16 %v1071
    %v1361 = vunpack.c.h.b16 %v1071
    %v1362 = vunpack.c.l.b16 %v1072
    %v1363 = vunpack.c.h.b16 %v1072
    %v1364 = vunpack.c.l.b16 %v1073
    %v1365 = vunpack.c.h.b16 %v1073
    %v1366 = vunpack.c.l.b16 %v1074
    %v1367 = vunpack.c.h.b16 %v1074
    %v1368 = vunpack.c.l.b16 %v1075
    %v1369 = vunpack.c.h.b16 %v1075
    %v1370 = vunpack.c.l.b16 %v1076
    %v1371 = vunpack.c.h.b16 %v1076
    %v1372 = vunpack.c.l.b16 %v1077
    %v1373 = vunpack.c.h.b16 %v1077
    %v1374 = vunpack.c.l.b16 %v1078
    %v1375 = vunpack.c.h.b16 %v1078
    %v1376 = vunpack.c.l.b16 %v1079
    %v1377 = vunpack.c.h.b16 %v1079
    %v1378 = vunpack.c.l.b16 %v1080
    %v1379 = vunpack.c.h.b16 %v1080
    %v1380 = vunpack.c.l.b16 %v1081
    %v1381 = vunpack.c.h.b16 %v1081
    %v1382 = vunpack.c.l.b16 %v1082
    %v1383 = vunpack.c.h.b16 %v1082
    %v1384 = vunpack.c.l.b16 %v1083
    %v1385 = vunpack.c.h.b16 %v1083
    %v1386 = vunpack.c.l.b16 %v1084
    %v1387 = vunpack.c.h.b16 %v1084
    %v1388 = vunpack.c.l.b16 %v1085
    %v1389 = vunpack.c.h.b16 %v1085
    %v1390 = vunpack.c.l.b16 %v1086
    %v1391 = vunpack.c.h.b16 %v1086
    %v1392 = vunpack.c.l.b16 %v1087
    %v1393 = vunpack.c.h.b16 %v1087
    %v1394 = vunpack.c.l.b16 %v1088
    %v1395 = vunpack.c.h.b16 %v1088
    %v1396 = vunpack.c.l.b16 %v1089
    %v1397 = vunpack.c.h.b16 %v1089
    %v1398 = vunpack.c.l.b16 %v1090
    %v1399 = vunpack.c.h.b16 %v1090
    %v1400 = vunpack.c.l.b16 %v1091
    %v1401 = vunpack.c.h.b16 %v1091
    %v1402 = vunpack.c.l.b16 %v1092
    %v1403 = vunpack.c.h.b16 %v1092
    %v1404 = vunpack.c.l.b16 %v1093
    %v1405 = vunpack.c.h.b16 %v1093
    %v1406 = vunpack.c.l.b16 %v1094
    %v1407 = vunpack.c.h.b16 %v1094
    %v1408 = vunpack.c.l.b16 %v1095
    %v1409 = vunpack.c.h.b16 %v1095
    %v1410 = vunpack.c.l.b16 %v1096
    %v1411 = vunpack.c.h.b16 %v1096
    %v1412 = vunpack.c.l.b16 %v1097
    %v1413 = vunpack.c.h.b16 %v1097
    %v1414 = vunpack.c.l.b16 %v1098
    %v1415 = vunpack.c.h.b16 %v1098
    %v1416 = vunpack.c.l.b16 %v1099
    %v1417 = vunpack.c.h.b16 %v1099
    %v1418 = vunpack.c.l.b16 %v1100
    %v1419 = vunpack.c.h.b16 %v1100
    %v1420 = vunpack.c.l.b16 %v1101
    %v1421 = vunpack.c.h.b16 %v1101
    %v1422 = vunpack.c.l.b16 %v1102
    %v1423 = vunpack.c.h.b16 %v1102
    %v1424 = vunpack.c.l.b16 %v1103
    %v1425 = vunpack.c.h.b16 %v1103
    %v1426 = vunpack.c.l.b16 %v1104
    %v1427 = vunpack.c.h.b16 %v1104
    %v1428 = vunpack.c.l.b16 %v1105
    %v1429 = vunpack.c.h.b16 %v1105
    %v1430 = vunpack.c.l.b16 %v1106
    %v1431 = vunpack.c.h.b16 %v1106
    %v1432 = vunpack.c.l.b16 %v1107
    %v1433 = vunpack.c.h.b16 %v1107
    %v1434 = vunpack.c.l.b16 %v1108
    %v1435 = vunpack.c.h.b16 %v1108
    %v1436 = vunpack.c.l.b16 %v1109
    %v1437 = vunpack.c.h.b16 %v1109
    %v1438 = vunpack.c.l.b16 %v1110
    %v1439 = vunpack.c.h.b16 %v1110
    %v1440 = vunpack.c.l.b16 %v1111
    %v1441 = vunpack.c.h.b16 %v1111
    %v1442 = vunpack.c.l.b16 %v1112
    %v1443 = vunpack.c.h.b16 %v1112
    %v1444 = vunpack.c.l.b16 %v1113
    %v1445 = vunpack.c.h.b16 %v1113
    %v1446 = vunpack.c.l.b16 %v1114
    %v1447 = vunpack.c.h.b16 %v1114
    %v1448 = vunpack.c.l.b16 %v1115
    %v1449 = vunpack.c.h.b16 %v1115
    %v1450 = vunpack.c.l.b16 %v1116
    %v1451 = vunpack.c.h.b16 %v1116
    %v1452 = vunpack.c.l.b16 %v1117
    %v1453 = vunpack.c.h.b16 %v1117
    %v1454 = vunpack.c.l.b16 %v1118
    %v1455 = vunpack.c.h.b16 %v1118
    %v1456 = vunpack.c.l.b16 %v1119
    %v1457 = vunpack.c.h.b16 %v1119
    %v1458 = vunpack.c.l.b16 %v1120
    %v1459 = vunpack.c.h.b16 %v1120
    %v1460 = vunpack.c.l.b16 %v1121
    %v1461 = vunpack.c.h.b16 %v1121
    %v1462 = vunpack.c.l.b16 %v1122
    %v1463 = vunpack.c.h.b16 %v1122
    %v1464 = vunpack.c.l.b16 %v1123
    %v1465 = vunpack.c.h.b16 %v1123
    %v1466 = vunpack.c.l.b16 %v1124
    %v1467 = vunpack.c.h.b16 %v1124
    %v1468 = vunpack.c.l.b16 %v1125
    %v1469 = vunpack.c.h.b16 %v1125
    %v1470 = vunpack.c.l.b16 %v1126
    %v1471 = vunpack.c.h.b16 %v1126
    %v1472 = vunpack.c.l.b16 %v1127
    %v1473 = vunpack.c.h.b16 %v1127
    %v1474 = vunpack.c.l.b16 %v1128
    %v1475 = vunpack.c.h.b16 %v1128
    %v1476 = vunpack.c.l.b16 %v1129
    %v1477 = vunpack.c.h.b16 %v1129
    %v1478 = vunpack.c.l.b16 %v1130
    %v1479 = vunpack.c.h.b16 %v1130
    %v1480 = vunpack.c.l.b16 %v1131
    %v1481 = vunpack.c.h.b16 %v1131
    %v1482 = vunpack.c.l.b16 %v1132
    %v1483 = vunpack.c.h.b16 %v1132
    %v1484 = vunpack.c.l.b16 %v1133
    %v1485 = vunpack.c.h.b16 %v1133
    %v1486 = vunpack.c.l.b16 %v1134
    %v1487 = vunpack.c.h.b16 %v1134
    %v1488 = vunpack.c.l.b16 %v1135
    %v1489 = vunpack.c.h.b16 %v1135
    %v1490 = vunpack.c.l.b16 %v1136
    %v1491 = vunpack.c.h.b16 %v1136
    %v1492 = vunpack.c.l.b16 %v1137
    %v1493 = vunpack.c.h.b16 %v1137
    %v1494 = vunpack.c.l.b16 %v1138
    %v1495 = vunpack.c.h.b16 %v1138
    %v1496 = vunpack.c.l.b16 %v1139
    %v1497 = vunpack.c.h.b16 %v1139
    %v1498 = vunpack.c.l.b16 %v1140
    %v1499 = vunpack.c.h.b16 %v1140
    %v1500 = vunpack.c.l.b16 %v1141
    %v1501 = vunpack.c.h.b16 %v1141
    %v1502 = vunpack.c.l.b16 %v1142
    %v1503 = vunpack.c.h.b16 %v1142
    %v1504 = vunpack.c.l.b16 %v1143
    %v1505 = vunpack.c.h.b16 %v1143
    %v1506 = vunpack.c.l.b16 %v1144
    %v1507 = vunpack.c.h.b16 %v1144
    %v1508 = vunpack.c.l.b16 %v1145
    %v1509 = vunpack.c.h.b16 %v1145
    %v1510 = vunpack.c.l.b16 %v1146
    %v1511 = vunpack.c.h.b16 %v1146
    %v1512 = vunpack.c.l.b16 %v1147
    %v1513 = vunpack.c.h.b16 %v1147
    %v1514 = vunpack.c.l.b16 %v1148
    %v1515 = vunpack.c.h.b16 %v1148
    %v1516 = vunpack.c.l.b16 %v1149
    %v1517 = vunpack.c.h.b16 %v1149
    %v1518 = vunpack.c.l.b16 %v1150
    %v1519 = vunpack.c.h.b16 %v1150
    %v1520 = vunpack.c.l.b16 %v1151
    %v1521 = vunpack.c.h.b16 %v1151
    %v1522 = vunpack.c.l.b16 %v1152
    %v1523 = vunpack.c.h.b16 %v1152
    %v1524 = vunpack.c.l.b16 %v1153
    %v1525 = vunpack.c.h.b16 %v1153
    %v1526 = vunpack.c.l.b16 %v1154
    %v1527 = vunpack.c.h.b16 %v1154
    %v1528 = vunpack.c.l.b16 %v1155
    %v1529 = vunpack.c.h.b16 %v1155
    %v1530 = vunpack.c.l.b16 %v1156
    %v1531 = vunpack.c.h.b16 %v1156
    %v1532 = vunpack.c.l.b16 %v1157
    %v1533 = vunpack.c.h.b16 %v1157
    %v1534 = vunpack.c.l.b16 %v1158
    %v1535 = vunpack.c.h.b16 %v1158
    %v1536 = vunpack.c.l.b16 %v1159
    %v1537 = vunpack.c.h.b16 %v1159
    %v1538 = vunpack.c.l.b16 %v1160
    %v1539 = vunpack.c.h.b16 %v1160
    %v1540 = vunpack.c.l.b16 %v1161
    %v1541 = vunpack.c.h.b16 %v1161
    %v1542 = vunpack.c.l.b16 %v1162
    %v1543 = vunpack.c.h.b16 %v1162
    %v1544 = vunpack.c.l.b16 %v1163
    %v1545 = vunpack.c.h.b16 %v1163
    %v1546 = vunpack.c.l.b16 %v1164
    %v1547 = vunpack.c.h.b16 %v1164
    %v1548 = vunpack.c.l.b16 %v1165
    %v1549 = vunpack.c.h.b16 %v1165
    %v1550 = vpack.c.b16 %v1296, %v1294
    %v1551 = vpack.c.b16 %v1297, %v1295
    %v1552 = vpack.c.b16 %v1300, %v1298
    %v1553 = vpack.c.b16 %v1301, %v1299
    %v1554 = vpack.c.b16 %v1304, %v1302
    %v1555 = vpack.c.b16 %v1305, %v1303
    %v1556 = vpack.c.b16 %v1308, %v1306
    %v1557 = vpack.c.b16 %v1309, %v1307
    %v1558 = vpack.c.b16 %v1312, %v1310
    %v1559 = vpack.c.b16 %v1313, %v1311
    %v1560 = vpack.c.b16 %v1316, %v1314
    %v1561 = vpack.c.b16 %v1317, %v1315
    %v1562 = vpack.c.b16 %v1320, %v1318
    %v1563 = vpack.c.b16 %v1321, %v1319
    %v1564 = vpack.c.b16 %v1324, %v1322
    %v1565 = vpack.c.b16 %v1325, %v1323
    %v1566 = vpack.c.b16 %v1328, %v1326
    %v1567 = vpack.c.b16 %v1329, %v1327
    %v1568 = vpack.c.b16 %v1332, %v1330
    %v1569 = vpack.c.b16 %v1333, %v1331
    %v1570 = vpack.c.b16 %v1336, %v1334
    %v1571 = vpack.c.b16 %v1337, %v1335
    %v1572 = vpack.c.b16 %v1340, %v1338
    %v1573 = vpack.c.b16 %v1341, %v1339
    %v1574 = vpack.c.b16 %v1344, %v1342
    %v1575 = vpack.c.b16 %v1345, %v1343
    %v1576 = vpack.c.b16 %v1348, %v1346
    %v1577 = vpack.c.b16 %v1349, %v1347
    %v1578 = vpack.c.b16 %v1352, %v1350
    %v1579 = vpack.c.b16 %v1353, %v1351
    %v1580 = vpack.c.b16 %v1356, %v1354
    %v1581 = vpack.c.b16 %v1357, %v1355
    %v1582 = vpack.c.b16 %v1360, %v1358
    %v1583 = vpack.c.b16 %v1361, %v1359
    %v1584 = vpack.c.b16 %v1364, %v1362
    %v1585 = vpack.c.b16 %v1365, %v1363
    %v1586 = vpack.c.b16 %v1368, %v1366
    %v1587 = vpack.c.b16 %v1369, %v1367
    %v1588 = vpack.c.b16 %v1372, %v1370
    %v1589 = vpack.c.b16 %v1373, %v1371
    %v1590 = vpack.c.b16 %v1376, %v1374
    %v1591 = vpack.c.b16 %v1377, %v1375
    %v1592 = vpack.c.b16 %v1380, %v1378
    %v1593 = vpack.c.b16 %v1381, %v1379
    %v1594 = vpack.c.b16 %v1384, %v1382
    %v1595 = vpack.c.b16 %v1385, %v1383
    %v1596 = vpack.c.b16 %v1388, %v1386
    %v1597 = vpack.c.b16 %v1389, %v1387
    %v1598 = vpack.c.b16 %v1392, %v1390
    %v1599 = vpack.c.b16 %v1393, %v1391
    %v1600 = vpack.c.b16 %v1396, %v1394
    %v1601 = vpack.c.b16 %v1397, %v1395
    %v1602 = vpack.c.b16 %v1400, %v1398
    %v1603 = vpack.c.b16 %v1401, %v1399
    %v1604 = vpack.c.b16 %v1404, %v1402
    %v1605 = vpack.c.b16 %v1405, %v1403
    %v1606 = vpack.c.b16 %v1408, %v1406
    %v1607 = vpack.c.b16 %v1409, %v1407
    %v1608 = vpack.c.b16 %v1412, %v1410
    %v1609 = vpack.c.b16 %v1413, %v1411
    %v1610 = vpack.c.b16 %v1416, %v1414
    %v1611 = vpack.c.b16 %v1417, %v1415
    %v1612 = vpack.c.b16 %v1420, %v1418
    %v1613 = vpack.c.b16 %v1421, %v1419
    %v1614 = vpack.c.b16 %v1424, %v1422
    %v1615 = vpack.c.b16 %v1425, %v1423
    %v1616 = vpack.c.b16 %v1428, %v1426
    %v1617 = vpack.c.b16 %v1429, %v1427
    %v1618 = vpack.c.b16 %v1432, %v1430
    %v1619 = vpack.c.b16 %v1433, %v1431
    %v1620 = vpack.c.b16 %v1436, %v1434
    %v1621 = vpack.c.b16 %v1437, %v1435
    %v1622 = vpack.c.b16 %v1440, %v1438
    %v1623 = vpack.c.b16 %v1441, %v1439
    %v1624 = vpack.c.b16 %v1444, %v1442
    %v1625 = vpack.c.b16 %v1445, %v1443
    %v1626 = vpack.c.b16 %v1448, %v1446
    %v1627 = vpack.c.b16 %v1449, %v1447
    %v1628 = vpack.c.b16 %v1452, %v1450
    %v1629 = vpack.c.b16 %v1453, %v1451
    %v1630 = vpack.c.b16 %v1456, %v1454
    %v1631 = vpack.c.b16 %v1457, %v1455
    %v1632 = vpack.c.b16 %v1460, %v1458
    %v1633 = vpack.c.b16 %v1461, %v1459
    %v1634 = vpack.c.b16 %v1464, %v1462
    %v1635 = vpack.c.b16 %v1465, %v1463
    %v1636 = vpack.c.b16 %v1468, %v1466
    %v1637 = vpack.c.b16 %v1469, %v1467
    %v1638 = vpack.c.b16 %v1472, %v1470
    %v1639 = vpack.c.b16 %v1473, %v1471
    %v1640 = vpack.c.b16 %v1476, %v1474
    %v1641 = vpack.c.b16 %v1477, %v1475
    %v1642 = vpack.c.b16 %v1480, %v1478
    %v1643 = vpack.c.b16 %v1481, %v1479
    %v1644 = vpack.c.b16 %v1484, %v1482
    %v1645 = vpack.c.b16 %v1485, %v1483
    %v1646 = vpack.c.b16 %v1488, %v1486
    %v1647 = vpack.c.b16 %v1489, %v1487
    %v1648 = vpack.c.b16 %v1492, %v1490
    %v1649 = vpack.c.b16 %v1493, %v1491
    %v1650 = vpack.c.b16 %v1496, %v1494
    %v1651 = vpack.c.b16 %v1497, %v1495
    %v1652 = vpack.c.b16 %v1500, %v1498
    %v1653 = vpack.c.b16 %v1501, %v1499
    %v1654 = vpack.c.b16 %v1504, %v1502
    %v1655 = vpack.c.b16 %v1505, %v1503
    %v1656 = vpack.c.b16 %v1508, %v1506
    %v1657 = vpack.c.b16 %v1509, %v1507
    %v1658 = vpack.c.b16 %v1512, %v1510
    %v1659 = vpack.c.b16 %v1513, %v1511
    %v1660 = vpack.c.b16 %v1516, %v1514
    %v1661 = vpack.c.b16 %v1517, %v1515
    %v1662 = vpack.c.b16 %v1520, %v1518
    %v1663 = vpack.c.b16 %v1521, %v1519
    %v1664 = vpack.c.b16 %v1524, %v1522
    %v1665 = vpack.c.b16 %v1525, %v1523
    %v1666 = vpack.c.b16 %v1528, %v1526
    %v1667 = vpack.c.b16 %v1529, %v1527
    %v1668 = vpack.c.b16 %v1532, %v1530
    %v1669 = vpack.c.b16 %v1533, %v1531
    %v1670 = vpack.c.b16 %v1536, %v1534
    %v1671 = vpack.c.b16 %v1537, %v1535
    %v1672 = vpack.c.b16 %v1540, %v1538
    %v1673 = vpack.c.b16 %v1541, %v1539
    %v1674 = vpack.c.b16 %v1544, %v1542
    %v1675 = vpack.c.b16 %v1545, %v1543
    %v1676 = vpack.c.b16 %v1548, %v1546
    %v1677 = vpack.c.b16 %v1549, %v1547
    %1806 = vmatprep.subr.bf16.mxu0 %v1551
    %1807 = vmatpush1.bf16.msra.mxu0 %v1550
    %1808 = vmatprep.subr.bf16.mxu0 %v1553
    %1809 = vmatpush1.bf16.msra.mxu0 %v1552
    %1810 = vmatprep.subr.bf16.mxu0 %v1555
    %1811 = vmatpush1.bf16.msra.mxu0 %v1554
    %1812 = vmatprep.subr.bf16.mxu0 %v1557
    %1813 = vmatpush1.bf16.msra.mxu0 %v1556
    %1814 = vmatprep.subr.bf16.mxu0 %v1559
    %1815 = vmatpush1.bf16.msra.mxu0 %v1558
    %1816 = vmatprep.subr.bf16.mxu0 %v1561
    %1817 = vmatpush1.bf16.msra.mxu0 %v1560
    %1818 = vmatprep.subr.bf16.mxu0 %v1563
    %1819 = vmatpush1.bf16.msra.mxu0 %v1562
    %1820 = vmatprep.subr.bf16.mxu0 %v1565
    %1821 = vmatpush1.bf16.msra.mxu0 %v1564
    %1822 = vmatprep.subr.bf16.mxu0 %v1567
    %1823 = vmatpush1.bf16.msra.mxu0 %v1566
    %1824 = vmatprep.subr.bf16.mxu0 %v1569
    %1825 = vmatpush1.bf16.msra.mxu0 %v1568
    %1826 = vmatprep.subr.bf16.mxu0 %v1571
    %1827 = vmatpush1.bf16.msra.mxu0 %v1570
    %1828 = vmatprep.subr.bf16.mxu0 %v1573
    %1829 = vmatpush1.bf16.msra.mxu0 %v1572
    %1830 = vmatprep.subr.bf16.mxu0 %v1575
    %1831 = vmatpush1.bf16.msra.mxu0 %v1574
    %1832 = vmatprep.subr.bf16.mxu0 %v1577
    %1833 = vmatpush1.bf16.msra.mxu0 %v1576
    %1834 = vmatprep.subr.bf16.mxu0 %v1579
    %1835 = vmatpush1.bf16.msra.mxu0 %v1578
    %1836 = vmatprep.subr.bf16.mxu0 %v1581
    %1837 = vmatpush1.bf16.msra.mxu0 %v1580
    %1838 = vmatprep.mubr.bf16.mxu0 %v1031
    %1839 = vmatmul.mubr.bf16.gmra.mrb[0].mxu0 %v1030
    %v1840 = vpop.f32.mrb[0].mxu0
    %v1841 = vadd.f32 0.0, %v1840
    %v1842 = vpop.f32.mrb[0].mxu0
    %v1843 = vadd.f32 0.0, %v1842
    %v1844 = vpop.f32.mrb[0].mxu0
    %v1845 = vpop.f32.mrb[0].mxu0
    %1846 = vdwg.mxu0
    %1847 = vmatprep.subr.bf16.mxu0 %v1583
    %1848 = vmatpush1.bf16.msra.mxu0 %v1582
    %1849 = vmatprep.subr.bf16.mxu0 %v1585
    %1850 = vmatpush1.bf16.msra.mxu0 %v1584
    %1851 = vmatprep.subr.bf16.mxu0 %v1587
    %1852 = vmatpush1.bf16.msra.mxu0 %v1586
    %1853 = vmatprep.subr.bf16.mxu0 %v1589
    %1854 = vmatpush1.bf16.msra.mxu0 %v1588
    %1855 = vmatprep.subr.bf16.mxu0 %v1591
    %1856 = vmatpush1.bf16.msra.mxu0 %v1590
    %1857 = vmatprep.subr.bf16.mxu0 %v1593
    %1858 = vmatpush1.bf16.msra.mxu0 %v1592
    %1859 = vmatprep.subr.bf16.mxu0 %v1595
    %1860 = vmatpush1.bf16.msra.mxu0 %v1594
    %1861 = vmatprep.subr.bf16.mxu0 %v1597
    %1862 = vmatpush1.bf16.msra.mxu0 %v1596
    %1863 = vmatprep.subr.bf16.mxu0 %v1599
    %1864 = vmatpush1.bf16.msra.mxu0 %v1598
    %1865 = vmatprep.subr.bf16.mxu0 %v1601
    %1866 = vmatpush1.bf16.msra.mxu0 %v1600
    %1867 = vmatprep.subr.bf16.mxu0 %v1603
    %1868 = vmatpush1.bf16.msra.mxu0 %v1602
    %1869 = vmatprep.subr.bf16.mxu0 %v1605
    %1870 = vmatpush1.bf16.msra.mxu0 %v1604
    %1871 = vmatprep.subr.bf16.mxu0 %v1607
    %1872 = vmatpush1.bf16.msra.mxu0 %v1606
    %1873 = vmatprep.subr.bf16.mxu0 %v1609
    %1874 = vmatpush1.bf16.msra.mxu0 %v1608
    %1875 = vmatprep.subr.bf16.mxu0 %v1611
    %1876 = vmatpush1.bf16.msra.mxu0 %v1610
    %1877 = vmatprep.subr.bf16.mxu0 %v1613
    %1878 = vmatpush1.bf16.msra.mxu0 %v1612
    %1879 = vmatprep.mubr.bf16.mxu0 %v1033
    %1880 = vmatmul.mubr.bf16.gmra.mrb[0].mxu0 %v1032
    %v1881 = vpop.f32.mrb[0].mxu0
    %v1882 = vadd.f32 %v1841, %v1881
    %v1883 = vpop.f32.mrb[0].mxu0
    %v1884 = vadd.f32 %v1843, %v1883
    %v1885 = vpop.f32.mrb[0].mxu0
    %v1886 = vpop.f32.mrb[0].mxu0
    %1887 = vdwg.mxu0
    %1888 = vmatprep.subr.bf16.mxu0 %v1615
    %1889 = vmatpush1.bf16.msra.mxu0 %v1614
    %1890 = vmatprep.subr.bf16.mxu0 %v1617
    %1891 = vmatpush1.bf16.msra.mxu0 %v1616
    %1892 = vmatprep.subr.bf16.mxu0 %v1619
    %1893 = vmatpush1.bf16.msra.mxu0 %v1618
    %1894 = vmatprep.subr.bf16.mxu0 %v1621
    %1895 = vmatpush1.bf16.msra.mxu0 %v1620
    %1896 = vmatprep.subr.bf16.mxu0 %v1623
    %1897 = vmatpush1.bf16.msra.mxu0 %v1622
    %1898 = vmatprep.subr.bf16.mxu0 %v1625
    %1899 = vmatpush1.bf16.msra.mxu0 %v1624
    %1900 = vmatprep.subr.bf16.mxu0 %v1627
    %1901 = vmatpush1.bf16.msra.mxu0 %v1626
    %1902 = vmatprep.subr.bf16.mxu0 %v1629
    %1903 = vmatpush1.bf16.msra.mxu0 %v1628
    %1904 = vmatprep.subr.bf16.mxu0 %v1631
    %1905 = vmatpush1.bf16.msra.mxu0 %v1630
    %1906 = vmatprep.subr.bf16.mxu0 %v1633
    %1907 = vmatpush1.bf16.msra.mxu0 %v1632
    %1908 = vmatprep.subr.bf16.mxu0 %v1635
    %1909 = vmatpush1.bf16.msra.mxu0 %v1634
    %1910 = vmatprep.subr.bf16.mxu0 %v1637
    %1911 = vmatpush1.bf16.msra.mxu0 %v1636
    %1912 = vmatprep.subr.bf16.mxu0 %v1639
    %1913 = vmatpush1.bf16.msra.mxu0 %v1638
    %1914 = vmatprep.subr.bf16.mxu0 %v1641
    %1915 = vmatpush1.bf16.msra.mxu0 %v1640
    %1916 = vmatprep.subr.bf16.mxu0 %v1643
    %1917 = vmatpush1.bf16.msra.mxu0 %v1642
    %1918 = vmatprep.subr.bf16.mxu0 %v1645
    %1919 = vmatpush1.bf16.msra.mxu0 %v1644
    %1920 = vmatprep.mubr.bf16.mxu0 %v1035
    %1921 = vmatmul.mubr.bf16.gmra.mrb[0].mxu0 %v1034
    %v1922 = vpop.f32.mrb[0].mxu0
    %v1923 = vadd.f32 %v1882, %v1922
    %v1924 = vpop.f32.mrb[0].mxu0
    %v1925 = vadd.f32 %v1884, %v1924
    %v1926 = vpop.f32.mrb[0].mxu0
    %v1927 = vpop.f32.mrb[0].mxu0
    %1928 = vdwg.mxu0
    %1929 = vmatprep.subr.bf16.mxu0 %v1647
    %1930 = vmatpush1.bf16.msra.mxu0 %v1646
    %1931 = vmatprep.subr.bf16.mxu0 %v1649
    %1932 = vmatpush1.bf16.msra.mxu0 %v1648
    %1933 = vmatprep.subr.bf16.mxu0 %v1651
    %1934 = vmatpush1.bf16.msra.mxu0 %v1650
    %1935 = vmatprep.subr.bf16.mxu0 %v1653
    %1936 = vmatpush1.bf16.msra.mxu0 %v1652
    %1937 = vmatprep.subr.bf16.mxu0 %v1655
    %1938 = vmatpush1.bf16.msra.mxu0 %v1654
    %1939 = vmatprep.subr.bf16.mxu0 %v1657
    %1940 = vmatpush1.bf16.msra.mxu0 %v1656
    %1941 = vmatprep.subr.bf16.mxu0 %v1659
    %1942 = vmatpush1.bf16.msra.mxu0 %v1658
    %1943 = vmatprep.subr.bf16.mxu0 %v1661
    %1944 = vmatpush1.bf16.msra.mxu0 %v1660
    %1945 = vmatprep.subr.bf16.mxu0 %v1663
    %1946 = vmatpush1.bf16.msra.mxu0 %v1662
    %1947 = vmatprep.subr.bf16.mxu0 %v1665
    %1948 = vmatpush1.bf16.msra.mxu0 %v1664
    %1949 = vmatprep.subr.bf16.mxu0 %v1667
    %1950 = vmatpush1.bf16.msra.mxu0 %v1666
    %1951 = vmatprep.subr.bf16.mxu0 %v1669
    %1952 = vmatpush1.bf16.msra.mxu0 %v1668
    %1953 = vmatprep.subr.bf16.mxu0 %v1671
    %1954 = vmatpush1.bf16.msra.mxu0 %v1670
    %1955 = vmatprep.subr.bf16.mxu0 %v1673
    %1956 = vmatpush1.bf16.msra.mxu0 %v1672
    %1957 = vmatprep.subr.bf16.mxu0 %v1675
    %1958 = vmatpush1.bf16.msra.mxu0 %v1674
    %1959 = vmatprep.subr.bf16.mxu0 %v1677
    %1960 = vmatpush1.bf16.msra.mxu0 %v1676
    %1961 = vmatprep.mubr.bf16.mxu0 %v1037
    %1962 = vmatmul.mubr.bf16.gmra.mrb[0].mxu0 %v1036
    %v1963 = vpop.f32.mrb[0].mxu0
    %v1964 = vadd.f32 %v1923, %v1963
    %v1965 = vpop.f32.mrb[0].mxu0
    %v1966 = vadd.f32 %v1925, %v1965
    %v1967 = vpop.f32.mrb[0].mxu0
    %v1968 = vpop.f32.mrb[0].mxu0
    %1969 = vdwg.mxu0
    %v1970 = vrot.slane %v1964, 4
    %v1971 = vadd.f32 %v1964, %v1970
    %v1972 = vrot.slane %v1971, 2
    %v1973 = vadd.f32 %v1971, %v1972
    %v1974 = vrot.slane %v1973, 1
    %v1975 = vadd.f32 %v1973, %v1974
    %v1976 = vrot.slane %v1966, 4
    %v1977 = vadd.f32 %v1966, %v1976
    %v1978 = vrot.slane %v1977, 2
    %v1979 = vadd.f32 %v1977, %v1978
    %v1980 = vrot.slane %v1979, 1
    %v1981 = vadd.f32 %v1979, %v1980
    %v1982 = vmul.f32 %v1975, %v690
    %v1983 = vmul.f32 %v1981, %v690
    %v1984 = vmul.f32 %v1964, %v1964
    %v1985 = vmul.f32 %v1966, %v1966
    %v1986 = vrot.slane %v1984, 4
    %v1987 = vadd.f32 %v1984, %v1986
    %v1988 = vrot.slane %v1987, 2
    %v1989 = vadd.f32 %v1987, %v1988
    %v1990 = vrot.slane %v1989, 1
    %v1991 = vadd.f32 %v1989, %v1990
    %v1992 = vrot.slane %v1985, 4
    %v1993 = vadd.f32 %v1985, %v1992
    %v1994 = vrot.slane %v1993, 2
    %v1995 = vadd.f32 %v1993, %v1994
    %v1996 = vrot.slane %v1995, 1
    %v1997 = vadd.f32 %v1995, %v1996
    %v1998 = vmul.f32 %v1991, %v690
    %v1999 = vmul.f32 %v1997, %v690
    %v2000 = vmul.f32 %v1982, %v1982
    %v2001 = vmul.f32 %v1983, %v1983
    %v2002 = vsub.f32 %v1998, %v2000
    %v2003 = vsub.f32 %v1999, %v2001
    %v2004 = vld [vmem:[%s4] ss:$2 sm:$0x3]
    %v2005 = vadd.f32 %v2002, 1e-05
    %v2006 = vadd.f32 %v2003, 1e-05
    %v2007 = vrsqrt.pop %v2005
    %v2008 = vrsqrt.pop %v2006
    %v2011 = vcombine.low %v2007, %v2008
    %v2013 = vunpack.c.l.s4 1966171168
    %v2014 = vunpack.c.0.s8 %v2013
    %v2015 = vlaneseq
    %v2016 = vshrl.u32 %v2015, 7
    %v2017 = vsub.s32 %v2014, %v2016
    %v2018 = vrot.slane %v2011, %v2017
    %v2020 = vunpack.c.l.s4 1966171168
    %v2021 = vunpack.c.0.s8 %v2020
    %v2022 = vlaneseq
    %v2023 = vshrl.u32 %v2022, 7
    %v2024 = vsub.s32 %v2021, %v2023
    %v2025 = vrot.slane %v2018, %v2024
    %v2027 = vmul.f32 %v2004, %v2025
    %s2028 = scalar_lea.vmem %s4, 1
    %v2029 = vld [vmem:[%s2028] ss:$2 sm:$0x3]
    %v2031 = vlaneseq
    %v2032 = vshrl.u32 %v2031, 7
    %v2033 = vsub.s32 0, %v2032
    %v2034 = vrot.slane %v2027, %v2033
    %v2035 = vlaneseq
    %v2036 = vshrl.u32 %v2035, 7
    %v2037 = vsub.s32 1, %v2036
    %v2038 = vrot.slane %v2027, %v2037
    %v2041 = vmul.f32 %v1982, %v2034
    %v2042 = vmul.f32 %v1983, %v2038
    %v2045 = vcombine.low %v2041, %v2042
    %v2047 = vunpack.c.l.s4 1966171168
    %v2048 = vunpack.c.0.s8 %v2047
    %v2049 = vlaneseq
    %v2050 = vshrl.u32 %v2049, 7
    %v2051 = vsub.s32 %v2048, %v2050
    %v2052 = vrot.slane %v2045, %v2051
    %v2054 = vunpack.c.l.s4 1966171168
    %v2055 = vunpack.c.0.s8 %v2054
    %v2056 = vlaneseq
    %v2057 = vshrl.u32 %v2056, 7
    %v2058 = vsub.s32 %v2055, %v2057
    %v2059 = vrot.slane %v2052, %v2058
    %v2061 = vsub.f32 %v2029, %v2059
    %v2062 = vmul.f32 %v1964, %v2034
    %v2063 = vmul.f32 %v1966, %v2038
    %v2065 = vlaneseq
    %v2066 = vshrl.u32 %v2065, 7
    %v2067 = vsub.s32 0, %v2066
    %v2068 = vrot.slane %v2061, %v2067
    %v2069 = vlaneseq
    %v2070 = vshrl.u32 %v2069, 7
    %v2071 = vsub.s32 1, %v2070
    %v2072 = vrot.slane %v2061, %v2071
    %v2075 = vadd.f32 %v2062, %v2068
    %v2076 = vadd.f32 %v2063, %v2072
    %v2077 = vmax.f32 %v2075, 0.0
    %v2078 = vmax.f32 %v2076, 0.0
    %v2079 = vpack.c.bf16 %v2077, %v2077
    %v2080 = vpack.c.bf16 %v2078, %v2078
    %v2081 = vld [vmem:[#allocation10] sm:$0xf]
    %v2082 = vld [vmem:[#allocation10 + $0x4] sm:$0xf]
    %v2083 = vld [vmem:[#allocation10 + $0x8] sm:$0xf]
    %v2084 = vld [vmem:[#allocation10 + $0xc] sm:$0xf]
    %v2085 = vld [vmem:[#allocation10 + $0x10] sm:$0xf]
    %v2086 = vld [vmem:[#allocation10 + $0x14] sm:$0xf]
    %v2087 = vld [vmem:[#allocation10 + $0x18] sm:$0xf]
    %v2088 = vld [vmem:[#allocation10 + $0x1c] sm:$0xf]
    %v2089 = vld [vmem:[#allocation10 + $0x20] sm:$0xf]
    %v2090 = vld [vmem:[#allocation10 + $0x24] sm:$0xf]
    %v2091 = vld [vmem:[#allocation10 + $0x28] sm:$0xf]
    %v2092 = vld [vmem:[#allocation10 + $0x2c] sm:$0xf]
    %v2093 = vld [vmem:[#allocation10 + $0x30] sm:$0xf]
    %v2094 = vld [vmem:[#allocation10 + $0x34] sm:$0xf]
    %v2095 = vld [vmem:[#allocation10 + $0x38] sm:$0xf]
    %v2096 = vld [vmem:[#allocation10 + $0x3c] sm:$0xf]
    %v2097 = vld [vmem:[#allocation10 + $0x40] sm:$0xf]
    %v2098 = vld [vmem:[#allocation10 + $0x44] sm:$0xf]
    %v2099 = vld [vmem:[#allocation10 + $0x48] sm:$0xf]
    %v2100 = vld [vmem:[#allocation10 + $0x4c] sm:$0xf]
    %v2101 = vld [vmem:[#allocation10 + $0x50] sm:$0xf]
    %v2102 = vld [vmem:[#allocation10 + $0x54] sm:$0xf]
    %v2103 = vld [vmem:[#allocation10 + $0x58] sm:$0xf]
    %v2104 = vld [vmem:[#allocation10 + $0x5c] sm:$0xf]
    %v2105 = vld [vmem:[#allocation10 + $0x60] sm:$0xf]
    %v2106 = vld [vmem:[#allocation10 + $0x64] sm:$0xf]
    %v2107 = vld [vmem:[#allocation10 + $0x68] sm:$0xf]
    %v2108 = vld [vmem:[#allocation10 + $0x6c] sm:$0xf]
    %v2109 = vld [vmem:[#allocation10 + $0x70] sm:$0xf]
    %v2110 = vld [vmem:[#allocation10 + $0x74] sm:$0xf]
    %v2111 = vld [vmem:[#allocation10 + $0x78] sm:$0xf]
    %v2112 = vld [vmem:[#allocation10 + $0x7c] sm:$0xf]
    %v2113 = vld [vmem:[%s6] sm:$0x1]
    %v2115 = vlaneseq
    %v2116 = vshrl.u32 %v2115, 7
    %v2117 = vsub.s32 0, %v2116
    %v2118 = vrot.slane %v2113, %v2117
    %v2152 = vunpack.c.l.b16 %v2081
    %v2153 = vunpack.c.l.b16 %v2082
    %v2154 = vunpack.c.l.b16 %v2083
    %v2155 = vunpack.c.l.b16 %v2084
    %v2156 = vunpack.c.l.b16 %v2085
    %v2157 = vunpack.c.l.b16 %v2086
    %v2158 = vunpack.c.l.b16 %v2087
    %v2159 = vunpack.c.l.b16 %v2088
    %v2160 = vunpack.c.l.b16 %v2089
    %v2161 = vunpack.c.l.b16 %v2090
    %v2162 = vunpack.c.l.b16 %v2091
    %v2163 = vunpack.c.l.b16 %v2092
    %v2164 = vunpack.c.l.b16 %v2093
    %v2165 = vunpack.c.l.b16 %v2094
    %v2166 = vunpack.c.l.b16 %v2095
    %v2167 = vunpack.c.l.b16 %v2096
    %v2168 = vunpack.c.l.b16 %v2097
    %v2169 = vunpack.c.l.b16 %v2098
    %v2170 = vunpack.c.l.b16 %v2099
    %v2171 = vunpack.c.l.b16 %v2100
    %v2172 = vunpack.c.l.b16 %v2101
    %v2173 = vunpack.c.l.b16 %v2102
    %v2174 = vunpack.c.l.b16 %v2103
    %v2175 = vunpack.c.l.b16 %v2104
    %v2176 = vunpack.c.l.b16 %v2105
    %v2177 = vunpack.c.l.b16 %v2106
    %v2178 = vunpack.c.l.b16 %v2107
    %v2179 = vunpack.c.l.b16 %v2108
    %v2180 = vunpack.c.l.b16 %v2109
    %v2181 = vunpack.c.l.b16 %v2110
    %v2182 = vunpack.c.l.b16 %v2111
    %v2183 = vunpack.c.l.b16 %v2112
    %v2184 = vpack.c.b16 %v2153, %v2152
    %v2185 = vpack.c.b16 %v2155, %v2154
    %v2186 = vpack.c.b16 %v2157, %v2156
    %v2187 = vpack.c.b16 %v2159, %v2158
    %v2188 = vpack.c.b16 %v2161, %v2160
    %v2189 = vpack.c.b16 %v2163, %v2162
    %v2190 = vpack.c.b16 %v2165, %v2164
    %v2191 = vpack.c.b16 %v2167, %v2166
    %v2192 = vpack.c.b16 %v2169, %v2168
    %v2193 = vpack.c.b16 %v2171, %v2170
    %v2194 = vpack.c.b16 %v2173, %v2172
    %v2195 = vpack.c.b16 %v2175, %v2174
    %v2196 = vpack.c.b16 %v2177, %v2176
    %v2197 = vpack.c.b16 %v2179, %v2178
    %v2198 = vpack.c.b16 %v2181, %v2180
    %v2199 = vpack.c.b16 %v2183, %v2182
    %2216 = vmatprep.subr.bf16.mxu0 0
    %2217 = vmatpush1.bf16.msra.mxu0 %v2184
    %2218 = vmatprep.subr.bf16.mxu0 0
    %2219 = vmatpush1.bf16.msra.mxu0 %v2185
    %2220 = vmatprep.subr.bf16.mxu0 0
    %2221 = vmatpush1.bf16.msra.mxu0 %v2186
    %2222 = vmatprep.subr.bf16.mxu0 0
    %2223 = vmatpush1.bf16.msra.mxu0 %v2187
    %2224 = vmatprep.subr.bf16.mxu0 0
    %2225 = vmatpush1.bf16.msra.mxu0 %v2188
    %2226 = vmatprep.subr.bf16.mxu0 0
    %2227 = vmatpush1.bf16.msra.mxu0 %v2189
    %2228 = vmatprep.subr.bf16.mxu0 0
    %2229 = vmatpush1.bf16.msra.mxu0 %v2190
    %2230 = vmatprep.subr.bf16.mxu0 0
    %2231 = vmatpush1.bf16.msra.mxu0 %v2191
    %2232 = vmatprep.subr.bf16.mxu0 0
    %2233 = vmatpush1.bf16.msra.mxu0 %v2192
    %2234 = vmatprep.subr.bf16.mxu0 0
    %2235 = vmatpush1.bf16.msra.mxu0 %v2193
    %2236 = vmatprep.subr.bf16.mxu0 0
    %2237 = vmatpush1.bf16.msra.mxu0 %v2194
    %2238 = vmatprep.subr.bf16.mxu0 0
    %2239 = vmatpush1.bf16.msra.mxu0 %v2195
    %2240 = vmatprep.subr.bf16.mxu0 0
    %2241 = vmatpush1.bf16.msra.mxu0 %v2196
    %2242 = vmatprep.subr.bf16.mxu0 0
    %2243 = vmatpush1.bf16.msra.mxu0 %v2197
    %2244 = vmatprep.subr.bf16.mxu0 0
    %2245 = vmatpush1.bf16.msra.mxu0 %v2198
    %2246 = vmatprep.subr.bf16.mxu0 0
    %2247 = vmatpush1.bf16.msra.mxu0 %v2199
    %2248 = vmatprep.mubr.bf16.mxu0 %v2080
    %2249 = vmatmul.mubr.bf16.gmra.mrb[0].mxu0 %v2079
    %v2250 = vpop.f32.mrb[0].mxu0
    %v2251 = vadd.f32 %v2118, %v2250
    %v2252 = vpop.f32.mrb[0].mxu0
    %v2253 = vpop.f32.mrb[0].mxu0
    %v2254 = vpop.f32.mrb[0].mxu0
    %2255 = vdwg.mxu0
    %2256 = vst [vmem:[#allocation11] sm:$0xff] %v2251
    // Predicated region
    $region50: #{label_predictor_forward.1} parent=1 // pred_check
      _
    $region51: #{label_predictor_forward.1} parent=1 // pred_check_branch
      %2258 = sbr.rel (0) target = $region53
    $region52: #{label_predictor_forward.1} parent=1 // pred_region
      %s2260 = ssub.s32 128, 128
      %2261 = vsyncadd [#allocation4], %s2260
      %s2263 = sshll.u32 [#allocation11], 4
      %s2264 = int_to_ptr.vmem [resolvable:$true] %s2263
      %2266 = dma.vmem_to_hbm [thread:$0]  %s2264, 128, %s7, [#allocation4]
    $region53: #{label_predictor_forward.1} parent=1 // pred_fallthru
      _
    // Predicated region
    $region54: #{label_predictor_forward.1} parent=1 // pred_check
      _
    $region55: #{label_predictor_forward.1} parent=1 // pred_check_branch
      %2268 = sbr.rel (0) target = $region57
    $region56: #{label_predictor_forward.1} parent=1 // pred_region
      %2269 = dma.done [#allocation4], 128
    $region57: #{label_predictor_forward.1} parent=1 // pred_fallthru
      _
    %2270 = vsyncpa [#allocation3], 1
    %2271 = vsyncpa [#allocation6], 1
    %2272 = vsyncpa [#allocation9], 1
    %2273 = vsyncpa [#allocation4], 1

</llo_original>
